<compile_context>
chip_gen: v7x
topology: tpu7x:2x2x1
jax: 0.10.0
libtpu: 0.0.40
codegen_flags: <defaults>
</compile_context>

<pallas_src>
import numpy as np
import jax
import jax.numpy as jnp
from jax import lax
from jax.experimental import pallas as pl
from jax.experimental.pallas import tpu as pltpu


def diffusion_trainer_kernel(sa_ref, soma_ref, temb_ref,   # VMEM (Rt, 1) f32
                             mx_ref, mf_ref,               # VMEM (Rt, Rt) f32, resident
                             x0_ref, noise_ref, flow_ref,  # VMEM (Rt, HWt)
                             out_ref):                     # VMEM (Rt, HWt)
    # Whole-block, sublane-dense elementwise work (VPU). Inputs may be bf16;
    # accumulate in f32 (no-op cast for f32 inputs).
    x0 = x0_ref[...].astype(jnp.float32)
    nz = noise_ref[...].astype(jnp.float32)
    fl = flow_ref[...].astype(jnp.float32)

    # q_sample:  x_t = sqrt(a_bar)[t_b] * x_0 + sqrt(1 - a_bar)[t_b] * noise
    # (per-row scale columns broadcast along the lane axis -> one FMA per block)
    x_t = sa_ref[...] * x0 + soma_ref[...] * nz

    # synthetic model(x_t, t, flow): two 1x1-conv channel mixes + t-embedding.
    # Each mix is a single dot of the resident block-diagonal weight
    # kron(I_bt, W) against the whole sublane-dense row block (no concat, no
    # per-batch-element dots); HIGHEST precision for f32 parity.
    pred = jnp.dot(mx_ref[...], x_t,
                   preferred_element_type=jnp.float32,
                   precision=lax.Precision.HIGHEST)
    pred = pred + jnp.dot(mf_ref[...], fl,
                          preferred_element_type=jnp.float32,
                          precision=lax.Precision.HIGHEST)
    pred = pred + temb_ref[...]           # per-row (Rt,1) bias, lane-broadcast

    # F.mse_loss(pred, noise, reduction='none') -> elementwise squared error
    d = pred - nz
    out_ref[...] = (d * d).astype(out_ref.dtype)


def _choose_tiles(rows, hw, C):
    """Pick (row_tile, hw_tile) for the 2D [B*C, H*W] layout.

    * hw_tile: lane-dense multiple of 128 dividing HW (else full HW), <= 2048.
    * row_tile: whole batch elements (multiple of C) and a multiple of 8 (or
      the full row count), capped at 64 so the resident kron(I, W) weight stays
      tiny and the small MXU dots stay hidden under the DMA.
    * Prefer >= 2 grid steps so the pipeline overlaps DMA/compute and both
      v7x TensorCores get work.  Blocks stay well under the default scoped
      VMEM on every generation (v5e 16 MiB, v6e/v7x 32 MiB).
    """
    if hw % 128 == 0:
        hw_t = 128
        while hw_t * 2 <= 2048 and hw % (hw_t * 2) == 0:
            hw_t *= 2
    else:
        # TODO(synk): pad HW to a multiple of 128 for unmasked lane-dense stores.
        hw_t = hw

    legal = [r for r in range(C, rows, C) if rows % r == 0 and r % 8 == 0]
    legal.append(rows)                       # full row dim is always legal
    fits = [r for r in legal if r <= 64] or [min(legal)]
    row_t = max(fits)

    # Ensure at least 2 grid steps when the shapes allow it.
    while (rows // row_t) * (hw // hw_t) < 2:
        if hw_t % 256 == 0:
            hw_t //= 2
        else:
            break
    return row_t, hw_t


def gaussian_diffusion_trainer_loss(x_0, flow, noise, t,
                                    sqrt_alphas_bar, sqrt_one_minus_alphas_bar,
                                    w_x, w_f, temb_table):
    """x_0, flow, noise: [B, C, H, W].  t: [B] int32.  Returns loss [B, C, H, W]."""
    B, C, H, W = x_0.shape
    HW = H * W
    rows = B * C

    # Sublane-dense 2D view (free metadata reshape): channel rows merge into
    # the second-to-last dim, so tiles are (8k, 128m) with no sublane padding.
    x0_r = x_0.reshape(rows, HW)
    fl_r = flow.reshape(rows, HW)
    nz_r = noise.reshape(rows, HW)

    # "extract" gathers -> tiny per-row (rows, 1) scale / bias columns (glue).
    sa = jnp.repeat(sqrt_alphas_bar[t].astype(jnp.float32), C).reshape(rows, 1)
    soma = jnp.repeat(sqrt_one_minus_alphas_bar[t].astype(jnp.float32),
                      C).reshape(rows, 1)
    temb = temb_table[t].astype(jnp.float32).reshape(rows, 1)

    row_t, hw_t = _choose_tiles(rows, HW, C)
    bt = row_t // C

    # Resident block-diagonal channel-mix weights: kron(I_bt, W) is identical
    # for every row block -> constant index_map, DMA'd once, lives in VMEM for
    # the whole grid (no per-batch weight duplication / HBM round trip).
    eye = jnp.eye(bt, dtype=jnp.float32)
    mx = jnp.kron(eye, w_x.astype(jnp.float32))      # (row_t, row_t)
    mf = jnp.kron(eye, w_f.astype(jnp.float32))      # (row_t, row_t)

    grid = (rows // row_t, HW // hw_t)

    img_spec = pl.BlockSpec((row_t, hw_t), lambda i, j: (i, j))
    col_spec = pl.BlockSpec((row_t, 1), lambda i, j: (i, 0))
    wgt_spec = pl.BlockSpec((row_t, row_t), lambda i, j: (0, 0))

    loss = pl.pallas_call(
        diffusion_trainer_kernel,
        out_shape=jax.ShapeDtypeStruct((rows, HW), jnp.float32),
        grid_spec=pltpu.PrefetchScalarGridSpec(
            num_scalar_prefetch=0,
            grid=grid,
            in_specs=[col_spec, col_spec, col_spec,
                      wgt_spec, wgt_spec,
                      img_spec, img_spec, img_spec],
            out_specs=img_spec),
        compiler_params=pltpu.CompilerParams(
            dimension_semantics=("parallel", "parallel")),
    )(sa, soma, temb, mx, mf, x0_r, nz_r, fl_r)

    return loss.reshape(B, C, H, W)


def _reference(x_0, flow, noise, t, sab, somab, w_x, w_f, temb_table):
    B, C, H, W = x_0.shape
    x0 = x_0.reshape(B, C, H * W).astype(jnp.float32)
    fl = flow.reshape(B, C, H * W).astype(jnp.float32)
    nz = noise.reshape(B, C, H * W).astype(jnp.float32)
    sa = sab[t].astype(jnp.float32)[:, None, None]
    so = somab[t].astype(jnp.float32)[:, None, None]
    temb = temb_table[t].astype(jnp.float32)[:, :, None]
    x_t = sa * x0 + so * nz
    hi = lax.Precision.HIGHEST
    pred = (jnp.einsum("oc,bch->boh", w_x, x_t, precision=hi)
            + jnp.einsum("oc,bch->boh", w_f, fl, precision=hi)
            + temb)
    return ((pred - nz) ** 2).reshape(B, C, H, W)


if __name__ == "__main__":
    B, C, H, W = 2, 4, 16, 16
    T = 1000
    beta_1, beta_T = 1e-4, 0.02

    # diffusion schedule buffers (double precision, then cast to f32, matching
    # register_buffer(double) + .float() in extract())
    betas = np.linspace(beta_1, beta_T, T, dtype=np.float64)
    alphas = 1.0 - betas
    alphas_bar = np.cumprod(alphas, axis=0)
    sqrt_alphas_bar = jnp.asarray(np.sqrt(alphas_bar), dtype=jnp.float32)
    sqrt_one_minus_alphas_bar = jnp.asarray(np.sqrt(1.0 - alphas_bar),
                                            dtype=jnp.float32)

    # deterministic inputs / synthetic model parameters
    key = jax.random.PRNGKey(0)
    k_x0, k_flow, k_t, k_noise, k_wx, k_wf, k_temb = jax.random.split(key, 7)
    x_0 = jax.random.normal(k_x0, (B, C, H, W), dtype=jnp.float32)
    flow = jax.random.normal(k_flow, (B, C, H, W), dtype=jnp.float32)
    t = jax.random.randint(k_t, (B,), 0, T, dtype=jnp.int32)
    noise = jax.random.normal(k_noise, (B, C, H, W), dtype=jnp.float32)

    w_x = 0.1 * jax.random.normal(k_wx, (C, C), dtype=jnp.float32)
    w_f = 0.1 * jax.random.normal(k_wf, (C, C), dtype=jnp.float32)
    temb_table = 0.1 * jax.random.normal(k_temb, (T, C), dtype=jnp.float32)

    loss = gaussian_diffusion_trainer_loss(
        x_0, flow, noise, t,
        sqrt_alphas_bar, sqrt_one_minus_alphas_bar,
        w_x, w_f, temb_table)
    loss = jax.block_until_ready(loss)

    ref = _reference(x_0, flow, noise, t,
                     sqrt_alphas_bar, sqrt_one_minus_alphas_bar,
                     w_x, w_f, temb_table)
    np.testing.assert_allclose(np.asarray(loss), np.asarray(ref),
                               rtol=1e-5, atol=1e-5)

    print("KERNEL_OK")
</pallas_src>

<mosaic_0001>
module attributes {stable_mosaic.version = 11 : i64} {
  func.func @diffusion_trainer_kernel(%arg0: i32, %arg1: i32, %arg2: memref<8x1xf32, #tpu.memory_space<vmem>>, %arg3: memref<8x1xf32, #tpu.memory_space<vmem>>, %arg4: memref<8x1xf32, #tpu.memory_space<vmem>>, %arg5: memref<8x8xf32, #tpu.memory_space<vmem>>, %arg6: memref<8x8xf32, #tpu.memory_space<vmem>>, %arg7: memref<8x128xf32, #tpu.memory_space<vmem>>, %arg8: memref<8x128xf32, #tpu.memory_space<vmem>>, %arg9: memref<8x128xf32, #tpu.memory_space<vmem>>, %arg10: memref<8x128xf32, #tpu.memory_space<vmem>>) attributes {dimension_semantics = [#tpu.dimension_semantics<parallel>, #tpu.dimension_semantics<parallel>], iteration_bounds = array<i64: 1, 2>, scalar_prefetch = 0 : i64, scratch_operands = 0 : i64, tpu.core_type = #tpu.core_type<tc>, window_params = [{transform_indices = @transform_0, window_bounds = array<i64: 8, 1>}, {transform_indices = @transform_1, window_bounds = array<i64: 8, 1>}, {transform_indices = @transform_2, window_bounds = array<i64: 8, 1>}, {pipeline_mode = #tpu.pipeline_mode<synchronous>, transform_indices = @transform_3, window_bounds = array<i64: 8, 8>}, {pipeline_mode = #tpu.pipeline_mode<synchronous>, transform_indices = @transform_4, window_bounds = array<i64: 8, 8>}, {transform_indices = @transform_5, window_bounds = array<i64: 8, 128>}, {transform_indices = @transform_6, window_bounds = array<i64: 8, 128>}, {transform_indices = @transform_7, window_bounds = array<i64: 8, 128>}, {transform_indices = @transform_8, window_bounds = array<i64: 8, 128>}]} {
    %c0 = arith.constant 0 : index
    %c0_0 = arith.constant 0 : index
    %0 = vector.load %arg7[%c0, %c0_0] : memref<8x128xf32, #tpu.memory_space<vmem>>, vector<8x128xf32>
    %c0_1 = arith.constant 0 : index
    %c0_2 = arith.constant 0 : index
    %1 = vector.load %arg8[%c0_1, %c0_2] : memref<8x128xf32, #tpu.memory_space<vmem>>, vector<8x128xf32>
    %c0_3 = arith.constant 0 : index
    %c0_4 = arith.constant 0 : index
    %2 = vector.load %arg9[%c0_3, %c0_4] : memref<8x128xf32, #tpu.memory_space<vmem>>, vector<8x128xf32>
    %c0_5 = arith.constant 0 : index
    %c0_6 = arith.constant 0 : index
    %3 = vector.load %arg2[%c0_5, %c0_6] : memref<8x1xf32, #tpu.memory_space<vmem>>, vector<8x1xf32>
    %4 = vector.broadcast %3 : vector<8x1xf32> to vector<8x128xf32>
    %5 = arith.mulf %4, %0 : vector<8x128xf32>
    %c0_7 = arith.constant 0 : index
    %c0_8 = arith.constant 0 : index
    %6 = vector.load %arg3[%c0_7, %c0_8] : memref<8x1xf32, #tpu.memory_space<vmem>>, vector<8x1xf32>
    %7 = vector.broadcast %6 : vector<8x1xf32> to vector<8x128xf32>
    %8 = arith.mulf %7, %1 : vector<8x128xf32>
    %9 = arith.addf %5, %8 : vector<8x128xf32>
    %c0_9 = arith.constant 0 : index
    %c0_10 = arith.constant 0 : index
    %10 = vector.load %arg5[%c0_9, %c0_10] : memref<8x8xf32, #tpu.memory_space<vmem>>, vector<8x8xf32>
    %cst = arith.constant dense<0.000000e+00> : vector<8x128xf32>
    %11 = tpu.matmul %10, %9, %cst {dimension_numbers = #tpu.dot_dimension_numbers<[1], [0], [0], [1], [0, 0, 1, 1], [], []>, precision = #tpu.contract_precision<fp32>} : vector<8x8xf32>, vector<8x128xf32>, vector<8x128xf32> -> vector<8x128xf32>
    %c0_11 = arith.constant 0 : index
    %c0_12 = arith.constant 0 : index
    %12 = vector.load %arg6[%c0_11, %c0_12] : memref<8x8xf32, #tpu.memory_space<vmem>>, vector<8x8xf32>
    %cst_13 = arith.constant dense<0.000000e+00> : vector<8x128xf32>
    %13 = tpu.matmul %12, %2, %cst_13 {dimension_numbers = #tpu.dot_dimension_numbers<[1], [0], [0], [1], [0, 0, 1, 1], [], []>, precision = #tpu.contract_precision<fp32>} : vector<8x8xf32>, vector<8x128xf32>, vector<8x128xf32> -> vector<8x128xf32>
    %14 = arith.addf %11, %13 : vector<8x128xf32>
    %c0_14 = arith.constant 0 : index
    %c0_15 = arith.constant 0 : index
    %15 = vector.load %arg4[%c0_14, %c0_15] : memref<8x1xf32, #tpu.memory_space<vmem>>, vector<8x1xf32>
    %16 = vector.broadcast %15 : vector<8x1xf32> to vector<8x128xf32>
    %17 = arith.addf %14, %16 : vector<8x128xf32>
    %18 = arith.subf %17, %1 : vector<8x128xf32>
    %19 = arith.mulf %18, %18 : vector<8x128xf32>
    %c0_16 = arith.constant 0 : index
    %c0_17 = arith.constant 0 : index
    %20 = vector.load %arg10[%c0_16, %c0_17] : memref<8x128xf32, #tpu.memory_space<vmem>>, vector<8x128xf32>
    tpu.vector_store %arg10[%c0_16, %c0_17], %19 {strides = array<i32>} : memref<8x128xf32, #tpu.memory_space<vmem>>, vector<8x128xf32>,
    return
  }
  func.func @transform_0(%arg0: i32, %arg1: i32) -> (i32, i32) {
    %c0_i32 = arith.constant 0 : i32
    %c0_i32_0 = arith.constant 0 : i32
    return %arg0, %c0_i32 : i32, i32
  }
  func.func @transform_1(%arg0: i32, %arg1: i32) -> (i32, i32) {
    %c0_i32 = arith.constant 0 : i32
    %c0_i32_0 = arith.constant 0 : i32
    return %arg0, %c0_i32 : i32, i32
  }
  func.func @transform_2(%arg0: i32, %arg1: i32) -> (i32, i32) {
    %c0_i32 = arith.constant 0 : i32
    %c0_i32_0 = arith.constant 0 : i32
    return %arg0, %c0_i32 : i32, i32
  }
  func.func @transform_3(%arg0: i32, %arg1: i32) -> (i32, i32) {
    %c0_i32 = arith.constant 0 : i32
    %c0_i32_0 = arith.constant 0 : i32
    %c0_i32_1 = arith.constant 0 : i32
    return %c0_i32, %c0_i32_0 : i32, i32
  }
  func.func @transform_4(%arg0: i32, %arg1: i32) -> (i32, i32) {
    %c0_i32 = arith.constant 0 : i32
    %c0_i32_0 = arith.constant 0 : i32
    %c0_i32_1 = arith.constant 0 : i32
    return %c0_i32, %c0_i32_0 : i32, i32
  }
  func.func @transform_5(%arg0: i32, %arg1: i32) -> (i32, i32) {
    %c0_i32 = arith.constant 0 : i32
    return %arg0, %arg1 : i32, i32
  }
  func.func @transform_6(%arg0: i32, %arg1: i32) -> (i32, i32) {
    %c0_i32 = arith.constant 0 : i32
    return %arg0, %arg1 : i32, i32
  }
  func.func @transform_7(%arg0: i32, %arg1: i32) -> (i32, i32) {
    %c0_i32 = arith.constant 0 : i32
    return %arg0, %arg1 : i32, i32
  }
  func.func @transform_8(%arg0: i32, %arg1: i32) -> (i32, i32) {
    %c0_i32 = arith.constant 0 : i32
    return %arg0, %arg1 : i32, i32
  }
}

</mosaic_0001>

<llo_original>
// kernel: tpu_custom_call.1
$region0: #{tpu_custom_call.1}
  #allocation0 [shape = 'u32[]', space=smem, size = 0x4, offset = 0x4, fixed_abs, tag = 'smem constant byte address 0x4 - core index']
  #allocation1 [shape = 'u32[144,128]{1,0:T(1,128)}', space=vmem, size = 0x12000, scoped, tag = 'internal scratch']
  %s0 = inlined_call_operand.vmem [shape: f32[8,1], index: 0, kind: input, shape index: {}]
  %s1 = inlined_call_operand.vmem [shape: f32[8,1], index: 1, kind: input, shape index: {}]
  %s2 = inlined_call_operand.vmem [shape: f32[8,1], index: 2, kind: input, shape index: {}]
  %s3 = inlined_call_operand.hbm [shape: f32[8,8], index: 3, kind: input, shape index: {}]
  %s4 = inlined_call_operand.hbm [shape: f32[8,8], index: 4, kind: input, shape index: {}]
  %s5 = inlined_call_operand.vmem [shape: f32[8,256], index: 5, kind: input, shape index: {}]
  %s6 = inlined_call_operand.vmem [shape: f32[8,256], index: 6, kind: input, shape index: {}]
  %s7 = inlined_call_operand.vmem [shape: f32[8,256], index: 7, kind: input, shape index: {}]
  %s8 = inlined_call_operand.hbm [shape: f32[8,256], index: 8, kind: output, shape index: {}]
  %s9 = sld [smem:[#allocation0]]
  $region73: #{tpu_custom_call.1} parent=0
    _
  %s11 = ssub.s32 1, %s9
  %s12 = scalar_select 0, %s11, %s9
  $region1: #{tpu_custom_call.1} parent=0
    #allocation2 [shape = 'u8[4096]{0}', space=vmem, size = 0x1000, scoped, tag = 'input window, operand 3, single buffered']
    #allocation3 [shape = 's32[2]{0}', space=sflag, size = 0x8, scoped, tag = 'scoped memory for tpu_custom_call.1']
    #allocation4 [shape = 's32[2]{0}', space=sflag, size = 0x8, scoped, tag = 'scoped memory for tpu_custom_call.1']
    #allocation5 [shape = 'u8[4096]{0}', space=vmem, size = 0x1000, scoped, tag = 'input window, operand 4, single buffered']
    #allocation6 [shape = 's32[1]{0}', space=sflag, size = 0x4, scoped, tag = 'scoped memory for tpu_custom_call.1']
    #allocation7 [shape = 'u8[8192]{0}', space=vmem, size = 0x2000, scoped, tag = 'output window, operand 0']
    %13 = vsyncpa [#allocation3], 0
    %14 = vsyncpa [#allocation6], 0
    %15 = vsyncpa [#allocation4], 0
    %s16 = scalar_lea.sflag [#allocation4], 1
    %17 = vsyncpa %s16, 0
    loop: start=0, step=1, limit=4
    $region2: #{tpu_custom_call.1} parent=1 // loop_pre_header
      _
    $region3: #{tpu_custom_call.1} parent=1 // loop_header
      %s19 = sphi 0, %s23
      %p20 = scmp.ge.s32.totalorder %s19, 4
      %s26 = sphi 0, %s38
      %s27 = sphi 0, %s34
      %s28 = sphi 0, %s26
      %s29 = sphi 0, %s27
      %s30 = sphi 0, %s28
      %s31 = sphi 0, %s29
      %s41 = sphi 0, %s43
      %s44 = sphi 0, %s41
      %s45 = sphi 0, %s44
      %s61 = sphi 0, %s45
      %s67 = sphi 0, %s69
      %s70 = sphi 0, %s67
      %s71 = sphi 0, %s70
      %s87 = sphi 0, %s71
      %s93 = sphi 0, %s95
      %s96 = sphi 0, %s93
      %s97 = sphi 0, %s96
      %s113 = sphi 0, %s97
      %s117 = sphi 0, %s117
      %s119 = sphi 0, %s117
      %s120 = sphi 0, %s119
      %s134 = sphi 0, %s120
      %s138 = sphi 0, %s138
      %s140 = sphi 0, %s138
      %s141 = sphi 0, %s140
      %s155 = sphi 0, %s141
      %s163 = sphi 0, %s165
      %s166 = sphi 0, %s163
      %s167 = sphi 0, %s166
      %s183 = sphi 0, %s167
      %s191 = sphi 0, %s193
      %s194 = sphi 0, %s191
      %s195 = sphi 0, %s194
      %s211 = sphi 0, %s195
      %s219 = sphi 0, %s221
      %s222 = sphi 0, %s219
      %s223 = sphi 0, %s222
      %s239 = sphi 0, %s223
      %s247 = sphi 0, %s249
      %s250 = sphi 0, %s247
      %s251 = sphi 0, %s250
      %s267 = sphi 0, %s251
    $region4: #{tpu_custom_call.1} parent=1 // loop_header_branch
      %22 = sbr.rel (%p20) target = $region8
    $region5: #{tpu_custom_call.1} parent=1 // loop_body
      %s24 = ssub.s32 %s19, 1
      %s25 = ssub.s32 %s19, 2
      %s32 = sadd.s32 1, %s27
      %p33 = scmp.ge.s32.totalorder %s32, 2
      %s34 = scalar_select %p33, 0, %s32
      %s35 = sadd.s32 1, %s26
      %s36 = scalar_select %p33, %s35, %s26
      %p37 = scmp.ge.s32.totalorder %s36, 1
      %s38 = scalar_select %p37, 0, %s36
      %s39 = ssub.s32 %s26, %s38
      %p40 = scmp.eq.s32.totalorder %s39, 0
      %s42 = sadd.s32 %s41, 1
      %s43 = scalar_select %p40, %s41, %s42
      %p46 = pneg %p40
      %p47 = scmp.eq.s32.totalorder %s19, 1
      %p48 = por %p46, %p47
      %p49 = scmp.ne.s32.totalorder %s41, %s44
      %p50 = scmp.eq.s32.totalorder %s19, 0
      %p51 = por %p49, %p50
      %p52 = scmp.ne.s32.totalorder %s41, %s44
      %p53 = scmp.eq.s32.totalorder %s24, 1
      %p54 = por %p52, %p53
      %p55 = scmp.ne.s32.totalorder %s44, %s45
      %p56 = scmp.eq.s32.totalorder %s24, 0
      %p57 = por %p55, %p56
      %p58 = scmp.ne.s32.totalorder %s44, %s45
      %p59 = scmp.eq.s32.totalorder %s25, 1
      %p60 = por %p58, %p59
      %p62 = scmp.ne.s32.totalorder %s45, %s61
      %p63 = scmp.eq.s32.totalorder %s25, 0
      %p64 = por %p62, %p63
      %s65 = ssub.s32 %s26, %s38
      %p66 = scmp.eq.s32.totalorder %s65, 0
      %s68 = sadd.s32 %s67, 1
      %s69 = scalar_select %p66, %s67, %s68
      %p72 = pneg %p66
      %p73 = scmp.eq.s32.totalorder %s19, 1
      %p74 = por %p72, %p73
      %p75 = scmp.ne.s32.totalorder %s67, %s70
      %p76 = scmp.eq.s32.totalorder %s19, 0
      %p77 = por %p75, %p76
      %p78 = scmp.ne.s32.totalorder %s67, %s70
      %p79 = scmp.eq.s32.totalorder %s24, 1
      %p80 = por %p78, %p79
      %p81 = scmp.ne.s32.totalorder %s70, %s71
      %p82 = scmp.eq.s32.totalorder %s24, 0
      %p83 = por %p81, %p82
      %p84 = scmp.ne.s32.totalorder %s70, %s71
      %p85 = scmp.eq.s32.totalorder %s25, 1
      %p86 = por %p84, %p85
      %p88 = scmp.ne.s32.totalorder %s71, %s87
      %p89 = scmp.eq.s32.totalorder %s25, 0
      %p90 = por %p88, %p89
      %s91 = ssub.s32 %s26, %s38
      %p92 = scmp.eq.s32.totalorder %s91, 0
      %s94 = sadd.s32 %s93, 1
      %s95 = scalar_select %p92, %s93, %s94
      %p98 = pneg %p92
      %p99 = scmp.eq.s32.totalorder %s19, 1
      %p100 = por %p98, %p99
      %p101 = scmp.ne.s32.totalorder %s93, %s96
      %p102 = scmp.eq.s32.totalorder %s19, 0
      %p103 = por %p101, %p102
      %p104 = scmp.ne.s32.totalorder %s93, %s96
      %p105 = scmp.eq.s32.totalorder %s24, 1
      %p106 = por %p104, %p105
      %p107 = scmp.ne.s32.totalorder %s96, %s97
      %p108 = scmp.eq.s32.totalorder %s24, 0
      %p109 = por %p107, %p108
      %p110 = scmp.ne.s32.totalorder %s96, %s97
      %p111 = scmp.eq.s32.totalorder %s25, 1
      %p112 = por %p110, %p111
      %p114 = scmp.ne.s32.totalorder %s97, %s113
      %p115 = scmp.eq.s32.totalorder %s25, 0
      %p116 = por %p114, %p115
      %s118 = sadd.s32 %s117, 1
      %p121 = scmp.eq.s32.totalorder %s19, 1
      %p122 = scmp.ne.s32.totalorder %s117, %s119
      %p123 = scmp.eq.s32.totalorder %s19, 0
      %p124 = por %p122, %p123
      %p125 = scmp.ne.s32.totalorder %s117, %s119
      %p126 = scmp.eq.s32.totalorder %s24, 1
      %p127 = por %p125, %p126
      %p128 = scmp.ne.s32.totalorder %s119, %s120
      %p129 = scmp.eq.s32.totalorder %s24, 0
      %p130 = por %p128, %p129
      %p131 = scmp.ne.s32.totalorder %s119, %s120
      %p132 = scmp.eq.s32.totalorder %s25, 1
      %p133 = por %p131, %p132
      %p135 = scmp.ne.s32.totalorder %s120, %s134
      %p136 = scmp.eq.s32.totalorder %s25, 0
      %p137 = por %p135, %p136
      %s139 = sadd.s32 %s138, 1
      %p142 = scmp.eq.s32.totalorder %s19, 1
      %p143 = scmp.ne.s32.totalorder %s138, %s140
      %p144 = scmp.eq.s32.totalorder %s19, 0
      %p145 = por %p143, %p144
      %p146 = scmp.ne.s32.totalorder %s138, %s140
      %p147 = scmp.eq.s32.totalorder %s24, 1
      %p148 = por %p146, %p147
      %p149 = scmp.ne.s32.totalorder %s140, %s141
      %p150 = scmp.eq.s32.totalorder %s24, 0
      %p151 = por %p149, %p150
      %p152 = scmp.ne.s32.totalorder %s140, %s141
      %p153 = scmp.eq.s32.totalorder %s25, 1
      %p154 = por %p152, %p153
      %p156 = scmp.ne.s32.totalorder %s141, %s155
      %p157 = scmp.eq.s32.totalorder %s25, 0
      %p158 = por %p156, %p157
      %s159 = ssub.s32 %s26, %s38
      %s160 = ssub.s32 %s27, %s34
      %s161 = sor.u32 %s159, %s160
      %p162 = scmp.eq.s32.totalorder %s161, 0
      %s164 = sadd.s32 %s163, 1
      %s165 = scalar_select %p162, %s163, %s164
      %p168 = pneg %p162
      %p169 = scmp.eq.s32.totalorder %s19, 1
      %p170 = por %p168, %p169
      %p171 = scmp.ne.s32.totalorder %s163, %s166
      %p172 = scmp.eq.s32.totalorder %s19, 0
      %p173 = por %p171, %p172
      %p174 = scmp.ne.s32.totalorder %s163, %s166
      %p175 = scmp.eq.s32.totalorder %s24, 1
      %p176 = por %p174, %p175
      %p177 = scmp.ne.s32.totalorder %s166, %s167
      %p178 = scmp.eq.s32.totalorder %s24, 0
      %p179 = por %p177, %p178
      %p180 = scmp.ne.s32.totalorder %s166, %s167
      %p181 = scmp.eq.s32.totalorder %s25, 1
      %p182 = por %p180, %p181
      %p184 = scmp.ne.s32.totalorder %s167, %s183
      %p185 = scmp.eq.s32.totalorder %s25, 0
      %p186 = por %p184, %p185
      %s187 = ssub.s32 %s26, %s38
      %s188 = ssub.s32 %s27, %s34
      %s189 = sor.u32 %s187, %s188
      %p190 = scmp.eq.s32.totalorder %s189, 0
      %s192 = sadd.s32 %s191, 1
      %s193 = scalar_select %p190, %s191, %s192
      %p196 = pneg %p190
      %p197 = scmp.eq.s32.totalorder %s19, 1
      %p198 = por %p196, %p197
      %p199 = scmp.ne.s32.totalorder %s191, %s194
      %p200 = scmp.eq.s32.totalorder %s19, 0
      %p201 = por %p199, %p200
      %p202 = scmp.ne.s32.totalorder %s191, %s194
      %p203 = scmp.eq.s32.totalorder %s24, 1
      %p204 = por %p202, %p203
      %p205 = scmp.ne.s32.totalorder %s194, %s195
      %p206 = scmp.eq.s32.totalorder %s24, 0
      %p207 = por %p205, %p206
      %p208 = scmp.ne.s32.totalorder %s194, %s195
      %p209 = scmp.eq.s32.totalorder %s25, 1
      %p210 = por %p208, %p209
      %p212 = scmp.ne.s32.totalorder %s195, %s211
      %p213 = scmp.eq.s32.totalorder %s25, 0
      %p214 = por %p212, %p213
      %s215 = ssub.s32 %s26, %s38
      %s216 = ssub.s32 %s27, %s34
      %s217 = sor.u32 %s215, %s216
      %p218 = scmp.eq.s32.totalorder %s217, 0
      %s220 = sadd.s32 %s219, 1
      %s221 = scalar_select %p218, %s219, %s220
      %p224 = pneg %p218
      %p225 = scmp.eq.s32.totalorder %s19, 1
      %p226 = por %p224, %p225
      %p227 = scmp.ne.s32.totalorder %s219, %s222
      %p228 = scmp.eq.s32.totalorder %s19, 0
      %p229 = por %p227, %p228
      %p230 = scmp.ne.s32.totalorder %s219, %s222
      %p231 = scmp.eq.s32.totalorder %s24, 1
      %p232 = por %p230, %p231
      %p233 = scmp.ne.s32.totalorder %s222, %s223
      %p234 = scmp.eq.s32.totalorder %s24, 0
      %p235 = por %p233, %p234
      %p236 = scmp.ne.s32.totalorder %s222, %s223
      %p237 = scmp.eq.s32.totalorder %s25, 1
      %p238 = por %p236, %p237
      %p240 = scmp.ne.s32.totalorder %s223, %s239
      %p241 = scmp.eq.s32.totalorder %s25, 0
      %p242 = por %p240, %p241
      %s243 = ssub.s32 %s26, %s38
      %s244 = ssub.s32 %s27, %s34
      %s245 = sor.u32 %s243, %s244
      %p246 = scmp.eq.s32.totalorder %s245, 0
      %s248 = sadd.s32 %s247, 1
      %s249 = scalar_select %p246, %s247, %s248
      %p252 = pneg %p246
      %p253 = scmp.eq.s32.totalorder %s19, 1
      %p254 = por %p252, %p253
      %p255 = scmp.ne.s32.totalorder %s247, %s250
      %p256 = scmp.eq.s32.totalorder %s19, 0
      %p257 = por %p255, %p256
      %p258 = scmp.ne.s32.totalorder %s247, %s250
      %p259 = scmp.eq.s32.totalorder %s24, 1
      %p260 = por %p258, %p259
      %p261 = scmp.ne.s32.totalorder %s250, %s251
      %p262 = scmp.eq.s32.totalorder %s24, 0
      %p263 = por %p261, %p262
      %p264 = scmp.ne.s32.totalorder %s250, %s251
      %p265 = scmp.eq.s32.totalorder %s25, 1
      %p266 = por %p264, %p265
      %p268 = scmp.ne.s32.totalorder %s251, %s267
      %p269 = scmp.eq.s32.totalorder %s25, 0
      %p270 = por %p268, %p269
      %p271 = scmp.le.s32.totalorder 1, %s19
      %p272 = scmp.lt.s32.totalorder %s19, 3
      %p273 = pnand %p271, %p272
      %p274 = pneg %p273
      // Predicated region
      $region9: #{tpu_custom_call.1} parent=5 // pred_check
        _
      $region10: #{tpu_custom_call.1} parent=5 // pred_check_branch
        %276 = sbr.rel (%p273) target = $region12
      $region11: #{tpu_custom_call.1} parent=5 // pred_region
        %s277 = ssub.s32 %s19, 1
        // Predicated region
        $region13: #{tpu_custom_call.1} parent=11 // pred_check
          %p278 = pneg %p57
        $region14: #{tpu_custom_call.1} parent=11 // pred_check_branch
          %280 = sbr.rel (%p278) target = $region16
        $region15: #{tpu_custom_call.1} parent=11 // pred_region
          %p281 = scmp.lt.s32.totalorder %s28, 0
          %s282 = scalar_select %p281, %s28, 0
          %s283 = smul.addr %s282, 8
          %s284 = scalar_lea.vmem %s0, %s283
        $region16: #{tpu_custom_call.1} parent=11 // pred_fallthru
          _
        // Predicated region
        $region17: #{tpu_custom_call.1} parent=11 // pred_check
          %p285 = pneg %p83
        $region18: #{tpu_custom_call.1} parent=11 // pred_check_branch
          %287 = sbr.rel (%p285) target = $region20
        $region19: #{tpu_custom_call.1} parent=11 // pred_region
          %p288 = scmp.lt.s32.totalorder %s28, 0
          %s289 = scalar_select %p288, %s28, 0
          %s290 = smul.addr %s289, 8
          %s291 = scalar_lea.vmem %s1, %s290
        $region20: #{tpu_custom_call.1} parent=11 // pred_fallthru
          _
        // Predicated region
        $region21: #{tpu_custom_call.1} parent=11 // pred_check
          %p292 = pneg %p109
        $region22: #{tpu_custom_call.1} parent=11 // pred_check_branch
          %294 = sbr.rel (%p292) target = $region24
        $region23: #{tpu_custom_call.1} parent=11 // pred_region
          %p295 = scmp.lt.s32.totalorder %s28, 0
          %s296 = scalar_select %p295, %s28, 0
          %s297 = smul.addr %s296, 8
          %s298 = scalar_lea.vmem %s2, %s297
        $region24: #{tpu_custom_call.1} parent=11 // pred_fallthru
          _
        // Predicated region
        $region25: #{tpu_custom_call.1} parent=11 // pred_check
          %p299 = pneg %p130
        $region26: #{tpu_custom_call.1} parent=11 // pred_check_branch
          %301 = sbr.rel (%p299) target = $region28
        $region27: #{tpu_custom_call.1} parent=11 // pred_region
          %s303 = ssub.s32 128, 128
          %304 = vsyncadd [#allocation3], %s303
          %s306 = sshll.u32 [#allocation2], 4
          %s307 = int_to_ptr.vmem [resolvable:$true] %s306
          %309 = dma.hbm_to_vmem [thread:$0]  %s3, 128, %s307, [#allocation3]
        $region28: #{tpu_custom_call.1} parent=11 // pred_fallthru
          _
        // Predicated region
        $region29: #{tpu_custom_call.1} parent=11 // pred_check
          %p310 = pneg %p151
        $region30: #{tpu_custom_call.1} parent=11 // pred_check_branch
          %312 = sbr.rel (%p310) target = $region32
        $region31: #{tpu_custom_call.1} parent=11 // pred_region
          %s314 = ssub.s32 128, 128
          %315 = vsyncadd [#allocation6], %s314
          %s317 = sshll.u32 [#allocation5], 4
          %s318 = int_to_ptr.vmem [resolvable:$true] %s317
          %320 = dma.hbm_to_vmem [thread:$0]  %s4, 128, %s318, [#allocation6]
        $region32: #{tpu_custom_call.1} parent=11 // pred_fallthru
          _
      $region12: #{tpu_custom_call.1} parent=5 // pred_fallthru
        _
      %p321 = scmp.lt.s32.totalorder %s19, 2
      // Predicated region
      $region33: #{tpu_custom_call.1} parent=5 // pred_check
        %p322 = pneg %p321
      $region34: #{tpu_custom_call.1} parent=5 // pred_check_branch
        %324 = sbr.rel (%p322) target = $region36
      $region35: #{tpu_custom_call.1} parent=5 // pred_region
        // Predicated region
        $region37: #{tpu_custom_call.1} parent=35 // pred_check
          %p325 = pneg %p173
        $region38: #{tpu_custom_call.1} parent=35 // pred_check_branch
          %327 = sbr.rel (%p325) target = $region40
        $region39: #{tpu_custom_call.1} parent=35 // pred_region
          %p328 = scmp.lt.s32.totalorder %s26, 0
          %s329 = scalar_select %p328, %s26, 0
          %p330 = scmp.lt.s32.totalorder %s27, 1
          %s331 = scalar_select %p330, %s27, 1
          %s332 = smul.addr %s329, 2
          %s333 = sadd.s32 %s331, %s332
          %s334 = smul.addr %s333, 8
          %s335 = scalar_lea.vmem %s5, %s334
        $region40: #{tpu_custom_call.1} parent=35 // pred_fallthru
          _
        // Predicated region
        $region41: #{tpu_custom_call.1} parent=35 // pred_check
          %p336 = pneg %p201
        $region42: #{tpu_custom_call.1} parent=35 // pred_check_branch
          %338 = sbr.rel (%p336) target = $region44
        $region43: #{tpu_custom_call.1} parent=35 // pred_region
          %p339 = scmp.lt.s32.totalorder %s26, 0
          %s340 = scalar_select %p339, %s26, 0
          %p341 = scmp.lt.s32.totalorder %s27, 1
          %s342 = scalar_select %p341, %s27, 1
          %s343 = smul.addr %s340, 2
          %s344 = sadd.s32 %s342, %s343
          %s345 = smul.addr %s344, 8
          %s346 = scalar_lea.vmem %s6, %s345
        $region44: #{tpu_custom_call.1} parent=35 // pred_fallthru
          _
        // Predicated region
        $region45: #{tpu_custom_call.1} parent=35 // pred_check
          %p347 = pneg %p229
        $region46: #{tpu_custom_call.1} parent=35 // pred_check_branch
          %349 = sbr.rel (%p347) target = $region48
        $region47: #{tpu_custom_call.1} parent=35 // pred_region
          %p350 = scmp.lt.s32.totalorder %s26, 0
          %s351 = scalar_select %p350, %s26, 0
          %p352 = scmp.lt.s32.totalorder %s27, 1
          %s353 = scalar_select %p352, %s27, 1
          %s354 = smul.addr %s351, 2
          %s355 = sadd.s32 %s353, %s354
          %s356 = smul.addr %s355, 8
          %s357 = scalar_lea.vmem %s7, %s356
        $region48: #{tpu_custom_call.1} parent=35 // pred_fallthru
          _
      $region36: #{tpu_custom_call.1} parent=5 // pred_fallthru
        _
      %p358 = scmp.le.s32.totalorder 1, %s19
      %p359 = scmp.lt.s32.totalorder %s19, 3
      %p360 = pnand %p358, %p359
      %p361 = pneg %p360
      // Predicated region
      $region49: #{tpu_custom_call.1} parent=5 // pred_check
        _
      $region50: #{tpu_custom_call.1} parent=5 // pred_check_branch
        %363 = sbr.rel (%p360) target = $region52
      $region51: #{tpu_custom_call.1} parent=5 // pred_region
        %s364 = ssub.s32 %s19, 1
        // Predicated region
        $region53: #{tpu_custom_call.1} parent=51 // pred_check
          %p365 = pneg %p130
        $region54: #{tpu_custom_call.1} parent=51 // pred_check_branch
          %367 = sbr.rel (%p365) target = $region56
        $region55: #{tpu_custom_call.1} parent=51 // pred_region
          %368 = dma.done [#allocation3], 128
        $region56: #{tpu_custom_call.1} parent=51 // pred_fallthru
          _
        // Predicated region
        $region57: #{tpu_custom_call.1} parent=51 // pred_check
          %p369 = pneg %p151
        $region58: #{tpu_custom_call.1} parent=51 // pred_check_branch
          %371 = sbr.rel (%p369) target = $region60
        $region59: #{tpu_custom_call.1} parent=51 // pred_region
          %372 = dma.done [#allocation6], 128
        $region60: #{tpu_custom_call.1} parent=51 // pred_fallthru
          _
        %p373 = scmp.lt.s32.totalorder %s28, 0
        %s374 = scalar_select %p373, %s28, 0
        %s375 = smul.addr %s374, 8
        %s376 = scalar_lea.vmem %s0, %s375
        %p377 = pneg %p57
        %p378 = pneg %p54
        %p379 = scmp.lt.s32.totalorder %s28, 0
        %s380 = scalar_select %p379, %s28, 0
        %s381 = smul.addr %s380, 8
        %s382 = scalar_lea.vmem %s1, %s381
        %p383 = pneg %p83
        %p384 = pneg %p80
        %p385 = scmp.lt.s32.totalorder %s28, 0
        %s386 = scalar_select %p385, %s28, 0
        %s387 = smul.addr %s386, 8
        %s388 = scalar_lea.vmem %s2, %s387
        %p389 = pneg %p109
        %p390 = pneg %p106
        %p391 = pneg %p130
        %p392 = pneg %p127
        %p393 = pneg %p151
        %p394 = pneg %p148
        %p395 = scmp.lt.s32.totalorder %s28, 0
        %s396 = scalar_select %p395, %s28, 0
        %p397 = scmp.lt.s32.totalorder %s29, 1
        %s398 = scalar_select %p397, %s29, 1
        %s399 = smul.addr %s396, 2
        %s400 = sadd.s32 %s398, %s399
        %s401 = smul.addr %s400, 8
        %s402 = scalar_lea.vmem %s5, %s401
        %p403 = pneg %p179
        %p404 = pneg %p176
        %p405 = scmp.lt.s32.totalorder %s28, 0
        %s406 = scalar_select %p405, %s28, 0
        %p407 = scmp.lt.s32.totalorder %s29, 1
        %s408 = scalar_select %p407, %s29, 1
        %s409 = smul.addr %s406, 2
        %s410 = sadd.s32 %s408, %s409
        %s411 = smul.addr %s410, 8
        %s412 = scalar_lea.vmem %s6, %s411
        %p413 = pneg %p207
        %p414 = pneg %p204
        %p415 = scmp.lt.s32.totalorder %s28, 0
        %s416 = scalar_select %p415, %s28, 0
        %p417 = scmp.lt.s32.totalorder %s29, 1
        %s418 = scalar_select %p417, %s29, 1
        %s419 = smul.addr %s416, 2
        %s420 = sadd.s32 %s418, %s419
        %s421 = smul.addr %s420, 8
        %s422 = scalar_lea.vmem %s7, %s421
        %p423 = pneg %p235
        %p424 = pneg %p232
        %p425 = pneg %p263
        %p426 = pneg %p260
        %s427 = sand.u32 %s250, 1
        %s428 = scalar_lea.sflag [#allocation4], %s427
        %s429 = sand.u32 %s250, 1
        %s430 = smul.addr %s429, 8
        %s431 = scalar_lea.vmem [#allocation7], %s430
        %p432 = scmp.lt.s32.totalorder %s28, 0
        %s433 = scalar_select %p432, %s28, 0
        %s434 = smul.addr %s433, 8
        %s435 = scalar_lea.vmem %s0, %s434
        %p436 = scmp.lt.s32.totalorder %s28, 0
        %s437 = scalar_select %p436, %s28, 0
        %s438 = smul.addr %s437, 8
        %s439 = scalar_lea.vmem %s1, %s438
        %p440 = scmp.lt.s32.totalorder %s28, 0
        %s441 = scalar_select %p440, %s28, 0
        %s442 = smul.addr %s441, 8
        %s443 = scalar_lea.vmem %s2, %s442
        %p444 = scmp.lt.s32.totalorder %s28, 0
        %s445 = scalar_select %p444, %s28, 0
        %p446 = scmp.lt.s32.totalorder %s29, 1
        %s447 = scalar_select %p446, %s29, 1
        %s448 = smul.addr %s445, 2
        %s449 = sadd.s32 %s447, %s448
        %s450 = smul.addr %s449, 8
        %s451 = scalar_lea.vmem %s5, %s450
        %p452 = scmp.lt.s32.totalorder %s28, 0
        %s453 = scalar_select %p452, %s28, 0
        %p454 = scmp.lt.s32.totalorder %s29, 1
        %s455 = scalar_select %p454, %s29, 1
        %s456 = smul.addr %s453, 2
        %s457 = sadd.s32 %s455, %s456
        %s458 = smul.addr %s457, 8
        %s459 = scalar_lea.vmem %s6, %s458
        %p460 = scmp.lt.s32.totalorder %s28, 0
        %s461 = scalar_select %p460, %s28, 0
        %p462 = scmp.lt.s32.totalorder %s29, 1
        %s463 = scalar_select %p462, %s29, 1
        %s464 = smul.addr %s461, 2
        %s465 = sadd.s32 %s463, %s464
        %s466 = smul.addr %s465, 8
        %s467 = scalar_lea.vmem %s7, %s466
        %v468 = vld [vmem:[%s451] sm:$0xff]
        %v469 = vld [vmem:[%s459] sm:$0xff]
        %v470 = vld [vmem:[%s467] sm:$0xff]
        %v471 = vld [vmem:[%s435] sm:$0xff]
        %473 = vset.pattern.permute.xlu0 0
        %474 = vperm.xlu0 %473, %v471
        %v475 = vpop.permute.xlu0 %474
        %v477 = vmul.f32 %v475, %v468
        %v478 = vld [vmem:[%s439] sm:$0xff]
        %480 = vset.pattern.permute.xlu0 0
        %481 = vperm.xlu0 %480, %v478
        %v482 = vpop.permute.xlu0 %481
        %v484 = vmul.f32 %v482, %v469
        %v485 = vadd.f32 %v477, %v484
        %v486 = vld [vmem:[#allocation2] sm:$0xff]
        %v487 = vld [vmem:[#allocation5] sm:$0xff]
        %vm488 = vcmask 64512
        %v490 = vsel %vm488, %v487, 0
        %492 = vmatprep.subr.mxu0 0.0
        %v493 = vand.u32 %v470, 4294901760
        %494 = vmatpush1.msra.mxu0 %v493
        %495 = vmatprep.subr.mxu0 0.0
        %496 = vmatpush1.msra.mxu0 0.0
        %497 = vmatprep.subr.mxu0 0.0
        %498 = vmatpush1.msra.mxu0 0.0
        %499 = vmatprep.subr.mxu0 0.0
        %500 = vmatpush1.msra.mxu0 0.0
        %501 = vmatprep.subr.mxu0 0.0
        %502 = vmatpush1.msra.mxu0 0.0
        %503 = vmatprep.subr.mxu0 0.0
        %504 = vmatpush1.msra.mxu0 0.0
        %505 = vmatprep.subr.mxu0 0.0
        %506 = vmatpush1.msra.mxu0 0.0
        %507 = vmatprep.subr.mxu0 0.0
        %508 = vmatpush1.msra.mxu0 0.0
        %509 = vmatprep.subr.mxu0 0.0
        %510 = vmatpush1.msra.mxu0 0.0
        %511 = vmatprep.subr.mxu0 0.0
        %512 = vmatpush1.msra.mxu0 0.0
        %513 = vmatprep.subr.mxu0 0.0
        %514 = vmatpush1.msra.mxu0 0.0
        %515 = vmatprep.subr.mxu0 0.0
        %516 = vmatpush1.msra.mxu0 0.0
        %517 = vmatprep.subr.mxu0 0.0
        %518 = vmatpush1.msra.mxu0 0.0
        %519 = vmatprep.subr.mxu0 0.0
        %520 = vmatpush1.msra.mxu0 0.0
        %521 = vmatprep.subr.mxu0 0.0
        %522 = vmatpush1.msra.mxu0 0.0
        %523 = vmatprep.subr.mxu0 0.0
        %524 = vmatpush1.msra.mxu0 0.0
        %525 = vmatprep.subr.mxu0 0.0
        %526 = vmatpush1.msra.mxu0 0.0
        %527 = vmatprep.subr.mxu0 0.0
        %528 = vmatpush1.msra.mxu0 0.0
        %529 = vmatprep.subr.mxu0 0.0
        %530 = vmatpush1.msra.mxu0 0.0
        %531 = vmatprep.subr.mxu0 0.0
        %532 = vmatpush1.msra.mxu0 0.0
        %533 = vmatprep.subr.mxu0 0.0
        %534 = vmatpush1.msra.mxu0 0.0
        %535 = vmatprep.subr.mxu0 0.0
        %536 = vmatpush1.msra.mxu0 0.0
        %537 = vmatprep.subr.mxu0 0.0
        %538 = vmatpush1.msra.mxu0 0.0
        %539 = vmatprep.subr.mxu0 0.0
        %540 = vmatpush1.msra.mxu0 0.0
        %541 = vmatprep.subr.mxu0 0.0
        %542 = vmatpush1.msra.mxu0 0.0
        %543 = vmatprep.subr.mxu0 0.0
        %544 = vmatpush1.msra.mxu0 0.0
        %545 = vmatprep.subr.mxu0 0.0
        %546 = vmatpush1.msra.mxu0 0.0
        %547 = vmatprep.subr.mxu0 0.0
        %548 = vmatpush1.msra.mxu0 0.0
        %549 = vmatprep.subr.mxu0 0.0
        %550 = vmatpush1.msra.mxu0 0.0
        %551 = vmatprep.subr.mxu0 0.0
        %552 = vmatpush1.msra.mxu0 0.0
        %553 = vmatprep.subr.mxu0 0.0
        %554 = vmatpush1.msra.mxu0 0.0
        %555 = vmatprep.subr.mxu0 0.0
        %556 = vmatpush1.msra.mxu0 0.0
        %557 = vmatprep.mubr.f32.mxu0 0.0
        %v558 = vand.u32 %v490, 4294901760
        %v559 = vsub.f32 %v490, %v558
        %v560 = vand.u32 %v559, 4294901760
        %v561 = vsub.f32 %v559, %v560
        %v562 = vand.u32 %v561, 4294901760
        %563 = vmatmul.mubr.f32.gmra.mrb[0].mxu0 %v562
        %v564 = vpop.f32.mrb[0].mxu0
        %v565 = vadd.f32 0.0, %v564
        %v566 = vpop.f32.mrb[0].mxu0
        %567 = vdwg.mxu0
        %568 = vmatprep.subr.mxu0 0.0
        %v569 = vand.u32 %v470, 4294901760
        %v570 = vsub.f32 %v470, %v569
        %v571 = vand.u32 %v570, 4294901760
        %v572 = vsub.f32 %v570, %v571
        %v573 = vand.u32 %v572, 4294901760
        %574 = vmatpush1.msra.mxu0 %v573
        %575 = vmatprep.subr.mxu0 0.0
        %576 = vmatpush1.msra.mxu0 0.0
        %577 = vmatprep.subr.mxu0 0.0
        %578 = vmatpush1.msra.mxu0 0.0
        %579 = vmatprep.subr.mxu0 0.0
        %580 = vmatpush1.msra.mxu0 0.0
        %581 = vmatprep.subr.mxu0 0.0
        %582 = vmatpush1.msra.mxu0 0.0
        %583 = vmatprep.subr.mxu0 0.0
        %584 = vmatpush1.msra.mxu0 0.0
        %585 = vmatprep.subr.mxu0 0.0
        %586 = vmatpush1.msra.mxu0 0.0
        %587 = vmatprep.subr.mxu0 0.0
        %588 = vmatpush1.msra.mxu0 0.0
        %589 = vmatprep.subr.mxu0 0.0
        %590 = vmatpush1.msra.mxu0 0.0
        %591 = vmatprep.subr.mxu0 0.0
        %592 = vmatpush1.msra.mxu0 0.0
        %593 = vmatprep.subr.mxu0 0.0
        %594 = vmatpush1.msra.mxu0 0.0
        %595 = vmatprep.subr.mxu0 0.0
        %596 = vmatpush1.msra.mxu0 0.0
        %597 = vmatprep.subr.mxu0 0.0
        %598 = vmatpush1.msra.mxu0 0.0
        %599 = vmatprep.subr.mxu0 0.0
        %600 = vmatpush1.msra.mxu0 0.0
        %601 = vmatprep.subr.mxu0 0.0
        %602 = vmatpush1.msra.mxu0 0.0
        %603 = vmatprep.subr.mxu0 0.0
        %604 = vmatpush1.msra.mxu0 0.0
        %605 = vmatprep.subr.mxu0 0.0
        %606 = vmatpush1.msra.mxu0 0.0
        %607 = vmatprep.subr.mxu0 0.0
        %608 = vmatpush1.msra.mxu0 0.0
        %609 = vmatprep.subr.mxu0 0.0
        %610 = vmatpush1.msra.mxu0 0.0
        %611 = vmatprep.subr.mxu0 0.0
        %612 = vmatpush1.msra.mxu0 0.0
        %613 = vmatprep.subr.mxu0 0.0
        %614 = vmatpush1.msra.mxu0 0.0
        %615 = vmatprep.subr.mxu0 0.0
        %616 = vmatpush1.msra.mxu0 0.0
        %617 = vmatprep.subr.mxu0 0.0
        %618 = vmatpush1.msra.mxu0 0.0
        %619 = vmatprep.subr.mxu0 0.0
        %620 = vmatpush1.msra.mxu0 0.0
        %621 = vmatprep.subr.mxu0 0.0
        %622 = vmatpush1.msra.mxu0 0.0
        %623 = vmatprep.subr.mxu0 0.0
        %624 = vmatpush1.msra.mxu0 0.0
        %625 = vmatprep.subr.mxu0 0.0
        %626 = vmatpush1.msra.mxu0 0.0
        %627 = vmatprep.subr.mxu0 0.0
        %628 = vmatpush1.msra.mxu0 0.0
        %629 = vmatprep.subr.mxu0 0.0
        %630 = vmatpush1.msra.mxu0 0.0
        %631 = vmatprep.subr.mxu0 0.0
        %632 = vmatpush1.msra.mxu0 0.0
        %633 = vmatprep.subr.mxu0 0.0
        %634 = vmatpush1.msra.mxu0 0.0
        %635 = vmatprep.subr.mxu0 0.0
        %636 = vmatpush1.msra.mxu0 0.0
        %637 = vmatprep.mubr.f32.mxu0 0.0
        %v638 = vand.u32 %v490, 4294901760
        %639 = vmatmul.mubr.f32.gmra.mrb[0].mxu0 %v638
        %v640 = vpop.f32.mrb[0].mxu0
        %v641 = vadd.f32 %v565, %v640
        %v642 = vpop.f32.mrb[0].mxu0
        %643 = vdwg.mxu0
        %644 = vmatprep.subr.mxu0 0.0
        %v645 = vand.u32 %v470, 4294901760
        %v646 = vsub.f32 %v470, %v645
        %647 = vmatpush1.msra.mxu0 %v646
        %648 = vmatprep.subr.mxu0 0.0
        %649 = vmatpush1.msra.mxu0 0.0
        %650 = vmatprep.subr.mxu0 0.0
        %651 = vmatpush1.msra.mxu0 0.0
        %652 = vmatprep.subr.mxu0 0.0
        %653 = vmatpush1.msra.mxu0 0.0
        %654 = vmatprep.subr.mxu0 0.0
        %655 = vmatpush1.msra.mxu0 0.0
        %656 = vmatprep.subr.mxu0 0.0
        %657 = vmatpush1.msra.mxu0 0.0
        %658 = vmatprep.subr.mxu0 0.0
        %659 = vmatpush1.msra.mxu0 0.0
        %660 = vmatprep.subr.mxu0 0.0
        %661 = vmatpush1.msra.mxu0 0.0
        %662 = vmatprep.subr.mxu0 0.0
        %663 = vmatpush1.msra.mxu0 0.0
        %664 = vmatprep.subr.mxu0 0.0
        %665 = vmatpush1.msra.mxu0 0.0
        %666 = vmatprep.subr.mxu0 0.0
        %667 = vmatpush1.msra.mxu0 0.0
        %668 = vmatprep.subr.mxu0 0.0
        %669 = vmatpush1.msra.mxu0 0.0
        %670 = vmatprep.subr.mxu0 0.0
        %671 = vmatpush1.msra.mxu0 0.0
        %672 = vmatprep.subr.mxu0 0.0
        %673 = vmatpush1.msra.mxu0 0.0
        %674 = vmatprep.subr.mxu0 0.0
        %675 = vmatpush1.msra.mxu0 0.0
        %676 = vmatprep.subr.mxu0 0.0
        %677 = vmatpush1.msra.mxu0 0.0
        %678 = vmatprep.subr.mxu0 0.0
        %679 = vmatpush1.msra.mxu0 0.0
        %680 = vmatprep.subr.mxu0 0.0
        %681 = vmatpush1.msra.mxu0 0.0
        %682 = vmatprep.subr.mxu0 0.0
        %683 = vmatpush1.msra.mxu0 0.0
        %684 = vmatprep.subr.mxu0 0.0
        %685 = vmatpush1.msra.mxu0 0.0
        %686 = vmatprep.subr.mxu0 0.0
        %687 = vmatpush1.msra.mxu0 0.0
        %688 = vmatprep.subr.mxu0 0.0
        %689 = vmatpush1.msra.mxu0 0.0
        %690 = vmatprep.subr.mxu0 0.0
        %691 = vmatpush1.msra.mxu0 0.0
        %692 = vmatprep.subr.mxu0 0.0
        %693 = vmatpush1.msra.mxu0 0.0
        %694 = vmatprep.subr.mxu0 0.0
        %695 = vmatpush1.msra.mxu0 0.0
        %696 = vmatprep.subr.mxu0 0.0
        %697 = vmatpush1.msra.mxu0 0.0
        %698 = vmatprep.subr.mxu0 0.0
        %699 = vmatpush1.msra.mxu0 0.0
        %700 = vmatprep.subr.mxu0 0.0
        %701 = vmatpush1.msra.mxu0 0.0
        %702 = vmatprep.subr.mxu0 0.0
        %703 = vmatpush1.msra.mxu0 0.0
        %704 = vmatprep.subr.mxu0 0.0
        %705 = vmatpush1.msra.mxu0 0.0
        %706 = vmatprep.subr.mxu0 0.0
        %707 = vmatpush1.msra.mxu0 0.0
        %708 = vmatprep.subr.mxu0 0.0
        %709 = vmatpush1.msra.mxu0 0.0
        %710 = vmatprep.mubr.f32.mxu0 0.0
        %v711 = vand.u32 %v490, 4294901760
        %v712 = vsub.f32 %v490, %v711
        %713 = vmatmul.mubr.f32.gmra.mrb[0].mxu0 %v712
        %v714 = vpop.f32.mrb[0].mxu0
        %v715 = vadd.f32 %v641, %v714
        %v716 = vpop.f32.mrb[0].mxu0
        %717 = vdwg.mxu0
        %718 = vmatprep.subr.mxu0 0.0
        %v719 = vand.u32 %v470, 4294901760
        %720 = vmatpush1.msra.mxu0 %v719
        %721 = vmatprep.subr.mxu0 0.0
        %722 = vmatpush1.msra.mxu0 0.0
        %723 = vmatprep.subr.mxu0 0.0
        %724 = vmatpush1.msra.mxu0 0.0
        %725 = vmatprep.subr.mxu0 0.0
        %726 = vmatpush1.msra.mxu0 0.0
        %727 = vmatprep.subr.mxu0 0.0
        %728 = vmatpush1.msra.mxu0 0.0
        %729 = vmatprep.subr.mxu0 0.0
        %730 = vmatpush1.msra.mxu0 0.0
        %731 = vmatprep.subr.mxu0 0.0
        %732 = vmatpush1.msra.mxu0 0.0
        %733 = vmatprep.subr.mxu0 0.0
        %734 = vmatpush1.msra.mxu0 0.0
        %735 = vmatprep.subr.mxu0 0.0
        %736 = vmatpush1.msra.mxu0 0.0
        %737 = vmatprep.subr.mxu0 0.0
        %738 = vmatpush1.msra.mxu0 0.0
        %739 = vmatprep.subr.mxu0 0.0
        %740 = vmatpush1.msra.mxu0 0.0
        %741 = vmatprep.subr.mxu0 0.0
        %742 = vmatpush1.msra.mxu0 0.0
        %743 = vmatprep.subr.mxu0 0.0
        %744 = vmatpush1.msra.mxu0 0.0
        %745 = vmatprep.subr.mxu0 0.0
        %746 = vmatpush1.msra.mxu0 0.0
        %747 = vmatprep.subr.mxu0 0.0
        %748 = vmatpush1.msra.mxu0 0.0
        %749 = vmatprep.subr.mxu0 0.0
        %750 = vmatpush1.msra.mxu0 0.0
        %751 = vmatprep.subr.mxu0 0.0
        %752 = vmatpush1.msra.mxu0 0.0
        %753 = vmatprep.subr.mxu0 0.0
        %754 = vmatpush1.msra.mxu0 0.0
        %755 = vmatprep.subr.mxu0 0.0
        %756 = vmatpush1.msra.mxu0 0.0
        %757 = vmatprep.subr.mxu0 0.0
        %758 = vmatpush1.msra.mxu0 0.0
        %759 = vmatprep.subr.mxu0 0.0
        %760 = vmatpush1.msra.mxu0 0.0
        %761 = vmatprep.subr.mxu0 0.0
        %762 = vmatpush1.msra.mxu0 0.0
        %763 = vmatprep.subr.mxu0 0.0
        %764 = vmatpush1.msra.mxu0 0.0
        %765 = vmatprep.subr.mxu0 0.0
        %766 = vmatpush1.msra.mxu0 0.0
        %767 = vmatprep.subr.mxu0 0.0
        %768 = vmatpush1.msra.mxu0 0.0
        %769 = vmatprep.subr.mxu0 0.0
        %770 = vmatpush1.msra.mxu0 0.0
        %771 = vmatprep.subr.mxu0 0.0
        %772 = vmatpush1.msra.mxu0 0.0
        %773 = vmatprep.subr.mxu0 0.0
        %774 = vmatpush1.msra.mxu0 0.0
        %775 = vmatprep.subr.mxu0 0.0
        %776 = vmatpush1.msra.mxu0 0.0
        %777 = vmatprep.subr.mxu0 0.0
        %778 = vmatpush1.msra.mxu0 0.0
        %779 = vmatprep.subr.mxu0 0.0
        %780 = vmatpush1.msra.mxu0 0.0
        %781 = vmatprep.subr.mxu0 0.0
        %782 = vmatpush1.msra.mxu0 0.0
        %783 = vmatprep.mubr.f32.mxu0 0.0
        %v784 = vand.u32 %v490, 4294901760
        %v785 = vsub.f32 %v490, %v784
        %v786 = vand.u32 %v785, 4294901760
        %787 = vmatmul.mubr.f32.gmra.mrb[0].mxu0 %v786
        %v788 = vpop.f32.mrb[0].mxu0
        %v789 = vadd.f32 %v715, %v788
        %v790 = vpop.f32.mrb[0].mxu0
        %791 = vdwg.mxu0
        %792 = vmatprep.subr.mxu0 0.0
        %v793 = vand.u32 %v470, 4294901760
        %v794 = vsub.f32 %v470, %v793
        %v795 = vand.u32 %v794, 4294901760
        %796 = vmatpush1.msra.mxu0 %v795
        %797 = vmatprep.subr.mxu0 0.0
        %798 = vmatpush1.msra.mxu0 0.0
        %799 = vmatprep.subr.mxu0 0.0
        %800 = vmatpush1.msra.mxu0 0.0
        %801 = vmatprep.subr.mxu0 0.0
        %802 = vmatpush1.msra.mxu0 0.0
        %803 = vmatprep.subr.mxu0 0.0
        %804 = vmatpush1.msra.mxu0 0.0
        %805 = vmatprep.subr.mxu0 0.0
        %806 = vmatpush1.msra.mxu0 0.0
        %807 = vmatprep.subr.mxu0 0.0
        %808 = vmatpush1.msra.mxu0 0.0
        %809 = vmatprep.subr.mxu0 0.0
        %810 = vmatpush1.msra.mxu0 0.0
        %811 = vmatprep.subr.mxu0 0.0
        %812 = vmatpush1.msra.mxu0 0.0
        %813 = vmatprep.subr.mxu0 0.0
        %814 = vmatpush1.msra.mxu0 0.0
        %815 = vmatprep.subr.mxu0 0.0
        %816 = vmatpush1.msra.mxu0 0.0
        %817 = vmatprep.subr.mxu0 0.0
        %818 = vmatpush1.msra.mxu0 0.0
        %819 = vmatprep.subr.mxu0 0.0
        %820 = vmatpush1.msra.mxu0 0.0
        %821 = vmatprep.subr.mxu0 0.0
        %822 = vmatpush1.msra.mxu0 0.0
        %823 = vmatprep.subr.mxu0 0.0
        %824 = vmatpush1.msra.mxu0 0.0
        %825 = vmatprep.subr.mxu0 0.0
        %826 = vmatpush1.msra.mxu0 0.0
        %827 = vmatprep.subr.mxu0 0.0
        %828 = vmatpush1.msra.mxu0 0.0
        %829 = vmatprep.subr.mxu0 0.0
        %830 = vmatpush1.msra.mxu0 0.0
        %831 = vmatprep.subr.mxu0 0.0
        %832 = vmatpush1.msra.mxu0 0.0
        %833 = vmatprep.subr.mxu0 0.0
        %834 = vmatpush1.msra.mxu0 0.0
        %835 = vmatprep.subr.mxu0 0.0
        %836 = vmatpush1.msra.mxu0 0.0
        %837 = vmatprep.subr.mxu0 0.0
        %838 = vmatpush1.msra.mxu0 0.0
        %839 = vmatprep.subr.mxu0 0.0
        %840 = vmatpush1.msra.mxu0 0.0
        %841 = vmatprep.subr.mxu0 0.0
        %842 = vmatpush1.msra.mxu0 0.0
        %843 = vmatprep.subr.mxu0 0.0
        %844 = vmatpush1.msra.mxu0 0.0
        %845 = vmatprep.subr.mxu0 0.0
        %846 = vmatpush1.msra.mxu0 0.0
        %847 = vmatprep.subr.mxu0 0.0
        %848 = vmatpush1.msra.mxu0 0.0
        %849 = vmatprep.subr.mxu0 0.0
        %850 = vmatpush1.msra.mxu0 0.0
        %851 = vmatprep.subr.mxu0 0.0
        %852 = vmatpush1.msra.mxu0 0.0
        %853 = vmatprep.subr.mxu0 0.0
        %854 = vmatpush1.msra.mxu0 0.0
        %855 = vmatprep.subr.mxu0 0.0
        %856 = vmatpush1.msra.mxu0 0.0
        %857 = vmatprep.subr.mxu0 0.0
        %858 = vmatpush1.msra.mxu0 0.0
        %859 = vmatprep.mubr.f32.mxu0 0.0
        %v860 = vand.u32 %v490, 4294901760
        %861 = vmatmul.mubr.f32.gmra.mrb[0].mxu0 %v860
        %v862 = vpop.f32.mrb[0].mxu0
        %v863 = vadd.f32 %v789, %v862
        %v864 = vpop.f32.mrb[0].mxu0
        %865 = vdwg.mxu0
        %866 = vmatprep.subr.mxu0 0.0
        %v867 = vand.u32 %v470, 4294901760
        %868 = vmatpush1.msra.mxu0 %v867
        %869 = vmatprep.subr.mxu0 0.0
        %870 = vmatpush1.msra.mxu0 0.0
        %871 = vmatprep.subr.mxu0 0.0
        %872 = vmatpush1.msra.mxu0 0.0
        %873 = vmatprep.subr.mxu0 0.0
        %874 = vmatpush1.msra.mxu0 0.0
        %875 = vmatprep.subr.mxu0 0.0
        %876 = vmatpush1.msra.mxu0 0.0
        %877 = vmatprep.subr.mxu0 0.0
        %878 = vmatpush1.msra.mxu0 0.0
        %879 = vmatprep.subr.mxu0 0.0
        %880 = vmatpush1.msra.mxu0 0.0
        %881 = vmatprep.subr.mxu0 0.0
        %882 = vmatpush1.msra.mxu0 0.0
        %883 = vmatprep.subr.mxu0 0.0
        %884 = vmatpush1.msra.mxu0 0.0
        %885 = vmatprep.subr.mxu0 0.0
        %886 = vmatpush1.msra.mxu0 0.0
        %887 = vmatprep.subr.mxu0 0.0
        %888 = vmatpush1.msra.mxu0 0.0
        %889 = vmatprep.subr.mxu0 0.0
        %890 = vmatpush1.msra.mxu0 0.0
        %891 = vmatprep.subr.mxu0 0.0
        %892 = vmatpush1.msra.mxu0 0.0
        %893 = vmatprep.subr.mxu0 0.0
        %894 = vmatpush1.msra.mxu0 0.0
        %895 = vmatprep.subr.mxu0 0.0
        %896 = vmatpush1.msra.mxu0 0.0
        %897 = vmatprep.subr.mxu0 0.0
        %898 = vmatpush1.msra.mxu0 0.0
        %899 = vmatprep.subr.mxu0 0.0
        %900 = vmatpush1.msra.mxu0 0.0
        %901 = vmatprep.subr.mxu0 0.0
        %902 = vmatpush1.msra.mxu0 0.0
        %903 = vmatprep.subr.mxu0 0.0
        %904 = vmatpush1.msra.mxu0 0.0
        %905 = vmatprep.subr.mxu0 0.0
        %906 = vmatpush1.msra.mxu0 0.0
        %907 = vmatprep.subr.mxu0 0.0
        %908 = vmatpush1.msra.mxu0 0.0
        %909 = vmatprep.subr.mxu0 0.0
        %910 = vmatpush1.msra.mxu0 0.0
        %911 = vmatprep.subr.mxu0 0.0
        %912 = vmatpush1.msra.mxu0 0.0
        %913 = vmatprep.subr.mxu0 0.0
        %914 = vmatpush1.msra.mxu0 0.0
        %915 = vmatprep.subr.mxu0 0.0
        %916 = vmatpush1.msra.mxu0 0.0
        %917 = vmatprep.subr.mxu0 0.0
        %918 = vmatpush1.msra.mxu0 0.0
        %919 = vmatprep.subr.mxu0 0.0
        %920 = vmatpush1.msra.mxu0 0.0
        %921 = vmatprep.subr.mxu0 0.0
        %922 = vmatpush1.msra.mxu0 0.0
        %923 = vmatprep.subr.mxu0 0.0
        %924 = vmatpush1.msra.mxu0 0.0
        %925 = vmatprep.subr.mxu0 0.0
        %926 = vmatpush1.msra.mxu0 0.0
        %927 = vmatprep.subr.mxu0 0.0
        %928 = vmatpush1.msra.mxu0 0.0
        %929 = vmatprep.subr.mxu0 0.0
        %930 = vmatpush1.msra.mxu0 0.0
        %931 = vmatprep.mubr.f32.mxu0 0.0
        %v932 = vand.u32 %v490, 4294901760
        %933 = vmatmul.mubr.f32.gmra.mrb[0].mxu0 %v932
        %v934 = vpop.f32.mrb[0].mxu0
        %v935 = vadd.f32 %v863, %v934
        %v936 = vpop.f32.mrb[0].mxu0
        %937 = vdwg.mxu0
        %v939 = vsel %vm488, %v486, 0
        %941 = vmatprep.subr.mxu0 0.0
        %v942 = vand.u32 %v485, 4294901760
        %943 = vmatpush1.msra.mxu0 %v942
        %944 = vmatprep.subr.mxu0 0.0
        %945 = vmatpush1.msra.mxu0 0.0
        %946 = vmatprep.subr.mxu0 0.0
        %947 = vmatpush1.msra.mxu0 0.0
        %948 = vmatprep.subr.mxu0 0.0
        %949 = vmatpush1.msra.mxu0 0.0
        %950 = vmatprep.subr.mxu0 0.0
        %951 = vmatpush1.msra.mxu0 0.0
        %952 = vmatprep.subr.mxu0 0.0
        %953 = vmatpush1.msra.mxu0 0.0
        %954 = vmatprep.subr.mxu0 0.0
        %955 = vmatpush1.msra.mxu0 0.0
        %956 = vmatprep.subr.mxu0 0.0
        %957 = vmatpush1.msra.mxu0 0.0
        %958 = vmatprep.subr.mxu0 0.0
        %959 = vmatpush1.msra.mxu0 0.0
        %960 = vmatprep.subr.mxu0 0.0
        %961 = vmatpush1.msra.mxu0 0.0
        %962 = vmatprep.subr.mxu0 0.0
        %963 = vmatpush1.msra.mxu0 0.0
        %964 = vmatprep.subr.mxu0 0.0
        %965 = vmatpush1.msra.mxu0 0.0
        %966 = vmatprep.subr.mxu0 0.0
        %967 = vmatpush1.msra.mxu0 0.0
        %968 = vmatprep.subr.mxu0 0.0
        %969 = vmatpush1.msra.mxu0 0.0
        %970 = vmatprep.subr.mxu0 0.0
        %971 = vmatpush1.msra.mxu0 0.0
        %972 = vmatprep.subr.mxu0 0.0
        %973 = vmatpush1.msra.mxu0 0.0
        %974 = vmatprep.subr.mxu0 0.0
        %975 = vmatpush1.msra.mxu0 0.0
        %976 = vmatprep.subr.mxu0 0.0
        %977 = vmatpush1.msra.mxu0 0.0
        %978 = vmatprep.subr.mxu0 0.0
        %979 = vmatpush1.msra.mxu0 0.0
        %980 = vmatprep.subr.mxu0 0.0
        %981 = vmatpush1.msra.mxu0 0.0
        %982 = vmatprep.subr.mxu0 0.0
        %983 = vmatpush1.msra.mxu0 0.0
        %984 = vmatprep.subr.mxu0 0.0
        %985 = vmatpush1.msra.mxu0 0.0
        %986 = vmatprep.subr.mxu0 0.0
        %987 = vmatpush1.msra.mxu0 0.0
        %988 = vmatprep.subr.mxu0 0.0
        %989 = vmatpush1.msra.mxu0 0.0
        %990 = vmatprep.subr.mxu0 0.0
        %991 = vmatpush1.msra.mxu0 0.0
        %992 = vmatprep.subr.mxu0 0.0
        %993 = vmatpush1.msra.mxu0 0.0
        %994 = vmatprep.subr.mxu0 0.0
        %995 = vmatpush1.msra.mxu0 0.0
        %996 = vmatprep.subr.mxu0 0.0
        %997 = vmatpush1.msra.mxu0 0.0
        %998 = vmatprep.subr.mxu0 0.0
        %999 = vmatpush1.msra.mxu0 0.0
        %1000 = vmatprep.subr.mxu0 0.0
        %1001 = vmatpush1.msra.mxu0 0.0
        %1002 = vmatprep.subr.mxu0 0.0
        %1003 = vmatpush1.msra.mxu0 0.0
        %1004 = vmatprep.subr.mxu0 0.0
        %1005 = vmatpush1.msra.mxu0 0.0
        %1006 = vmatprep.mubr.f32.mxu0 0.0
        %v1007 = vand.u32 %v939, 4294901760
        %v1008 = vsub.f32 %v939, %v1007
        %v1009 = vand.u32 %v1008, 4294901760
        %v1010 = vsub.f32 %v1008, %v1009
        %v1011 = vand.u32 %v1010, 4294901760
        %1012 = vmatmul.mubr.f32.gmra.mrb[0].mxu0 %v1011
        %v1013 = vpop.f32.mrb[0].mxu0
        %v1014 = vadd.f32 %v935, %v1013
        %v1015 = vpop.f32.mrb[0].mxu0
        %1016 = vdwg.mxu0
        %1017 = vmatprep.subr.mxu0 0.0
        %v1018 = vand.u32 %v485, 4294901760
        %v1019 = vsub.f32 %v485, %v1018
        %v1020 = vand.u32 %v1019, 4294901760
        %v1021 = vsub.f32 %v1019, %v1020
        %v1022 = vand.u32 %v1021, 4294901760
        %1023 = vmatpush1.msra.mxu0 %v1022
        %1024 = vmatprep.subr.mxu0 0.0
        %1025 = vmatpush1.msra.mxu0 0.0
        %1026 = vmatprep.subr.mxu0 0.0
        %1027 = vmatpush1.msra.mxu0 0.0
        %1028 = vmatprep.subr.mxu0 0.0
        %1029 = vmatpush1.msra.mxu0 0.0
        %1030 = vmatprep.subr.mxu0 0.0
        %1031 = vmatpush1.msra.mxu0 0.0
        %1032 = vmatprep.subr.mxu0 0.0
        %1033 = vmatpush1.msra.mxu0 0.0
        %1034 = vmatprep.subr.mxu0 0.0
        %1035 = vmatpush1.msra.mxu0 0.0
        %1036 = vmatprep.subr.mxu0 0.0
        %1037 = vmatpush1.msra.mxu0 0.0
        %1038 = vmatprep.subr.mxu0 0.0
        %1039 = vmatpush1.msra.mxu0 0.0
        %1040 = vmatprep.subr.mxu0 0.0
        %1041 = vmatpush1.msra.mxu0 0.0
        %1042 = vmatprep.subr.mxu0 0.0
        %1043 = vmatpush1.msra.mxu0 0.0
        %1044 = vmatprep.subr.mxu0 0.0
        %1045 = vmatpush1.msra.mxu0 0.0
        %1046 = vmatprep.subr.mxu0 0.0
        %1047 = vmatpush1.msra.mxu0 0.0
        %1048 = vmatprep.subr.mxu0 0.0
        %1049 = vmatpush1.msra.mxu0 0.0
        %1050 = vmatprep.subr.mxu0 0.0
        %1051 = vmatpush1.msra.mxu0 0.0
        %1052 = vmatprep.subr.mxu0 0.0
        %1053 = vmatpush1.msra.mxu0 0.0
        %1054 = vmatprep.subr.mxu0 0.0
        %1055 = vmatpush1.msra.mxu0 0.0
        %1056 = vmatprep.subr.mxu0 0.0
        %1057 = vmatpush1.msra.mxu0 0.0
        %1058 = vmatprep.subr.mxu0 0.0
        %1059 = vmatpush1.msra.mxu0 0.0
        %1060 = vmatprep.subr.mxu0 0.0
        %1061 = vmatpush1.msra.mxu0 0.0
        %1062 = vmatprep.subr.mxu0 0.0
        %1063 = vmatpush1.msra.mxu0 0.0
        %1064 = vmatprep.subr.mxu0 0.0
        %1065 = vmatpush1.msra.mxu0 0.0
        %1066 = vmatprep.subr.mxu0 0.0
        %1067 = vmatpush1.msra.mxu0 0.0
        %1068 = vmatprep.subr.mxu0 0.0
        %1069 = vmatpush1.msra.mxu0 0.0
        %1070 = vmatprep.subr.mxu0 0.0
        %1071 = vmatpush1.msra.mxu0 0.0
        %1072 = vmatprep.subr.mxu0 0.0
        %1073 = vmatpush1.msra.mxu0 0.0
        %1074 = vmatprep.subr.mxu0 0.0
        %1075 = vmatpush1.msra.mxu0 0.0
        %1076 = vmatprep.subr.mxu0 0.0
        %1077 = vmatpush1.msra.mxu0 0.0
        %1078 = vmatprep.subr.mxu0 0.0
        %1079 = vmatpush1.msra.mxu0 0.0
        %1080 = vmatprep.subr.mxu0 0.0
        %1081 = vmatpush1.msra.mxu0 0.0
        %1082 = vmatprep.subr.mxu0 0.0
        %1083 = vmatpush1.msra.mxu0 0.0
        %1084 = vmatprep.subr.mxu0 0.0
        %1085 = vmatpush1.msra.mxu0 0.0
        %1086 = vmatprep.mubr.f32.mxu0 0.0
        %v1087 = vand.u32 %v939, 4294901760
        %1088 = vmatmul.mubr.f32.gmra.mrb[0].mxu0 %v1087
        %v1089 = vpop.f32.mrb[0].mxu0
        %v1090 = vadd.f32 %v1014, %v1089
        %v1091 = vpop.f32.mrb[0].mxu0
        %1092 = vdwg.mxu0
        %1093 = vmatprep.subr.mxu0 0.0
        %v1094 = vand.u32 %v485, 4294901760
        %v1095 = vsub.f32 %v485, %v1094
        %1096 = vmatpush1.msra.mxu0 %v1095
        %1097 = vmatprep.subr.mxu0 0.0
        %1098 = vmatpush1.msra.mxu0 0.0
        %1099 = vmatprep.subr.mxu0 0.0
        %1100 = vmatpush1.msra.mxu0 0.0
        %1101 = vmatprep.subr.mxu0 0.0
        %1102 = vmatpush1.msra.mxu0 0.0
        %1103 = vmatprep.subr.mxu0 0.0
        %1104 = vmatpush1.msra.mxu0 0.0
        %1105 = vmatprep.subr.mxu0 0.0
        %1106 = vmatpush1.msra.mxu0 0.0
        %1107 = vmatprep.subr.mxu0 0.0
        %1108 = vmatpush1.msra.mxu0 0.0
        %1109 = vmatprep.subr.mxu0 0.0
        %1110 = vmatpush1.msra.mxu0 0.0
        %1111 = vmatprep.subr.mxu0 0.0
        %1112 = vmatpush1.msra.mxu0 0.0
        %1113 = vmatprep.subr.mxu0 0.0
        %1114 = vmatpush1.msra.mxu0 0.0
        %1115 = vmatprep.subr.mxu0 0.0
        %1116 = vmatpush1.msra.mxu0 0.0
        %1117 = vmatprep.subr.mxu0 0.0
        %1118 = vmatpush1.msra.mxu0 0.0
        %1119 = vmatprep.subr.mxu0 0.0
        %1120 = vmatpush1.msra.mxu0 0.0
        %1121 = vmatprep.subr.mxu0 0.0
        %1122 = vmatpush1.msra.mxu0 0.0
        %1123 = vmatprep.subr.mxu0 0.0
        %1124 = vmatpush1.msra.mxu0 0.0
        %1125 = vmatprep.subr.mxu0 0.0
        %1126 = vmatpush1.msra.mxu0 0.0
        %1127 = vmatprep.subr.mxu0 0.0
        %1128 = vmatpush1.msra.mxu0 0.0
        %1129 = vmatprep.subr.mxu0 0.0
        %1130 = vmatpush1.msra.mxu0 0.0
        %1131 = vmatprep.subr.mxu0 0.0
        %1132 = vmatpush1.msra.mxu0 0.0
        %1133 = vmatprep.subr.mxu0 0.0
        %1134 = vmatpush1.msra.mxu0 0.0
        %1135 = vmatprep.subr.mxu0 0.0
        %1136 = vmatpush1.msra.mxu0 0.0
        %1137 = vmatprep.subr.mxu0 0.0
        %1138 = vmatpush1.msra.mxu0 0.0
        %1139 = vmatprep.subr.mxu0 0.0
        %1140 = vmatpush1.msra.mxu0 0.0
        %1141 = vmatprep.subr.mxu0 0.0
        %1142 = vmatpush1.msra.mxu0 0.0
        %1143 = vmatprep.subr.mxu0 0.0
        %1144 = vmatpush1.msra.mxu0 0.0
        %1145 = vmatprep.subr.mxu0 0.0
        %1146 = vmatpush1.msra.mxu0 0.0
        %1147 = vmatprep.subr.mxu0 0.0
        %1148 = vmatpush1.msra.mxu0 0.0
        %1149 = vmatprep.subr.mxu0 0.0
        %1150 = vmatpush1.msra.mxu0 0.0
        %1151 = vmatprep.subr.mxu0 0.0
        %1152 = vmatpush1.msra.mxu0 0.0
        %1153 = vmatprep.subr.mxu0 0.0
        %1154 = vmatpush1.msra.mxu0 0.0
        %1155 = vmatprep.subr.mxu0 0.0
        %1156 = vmatpush1.msra.mxu0 0.0
        %1157 = vmatprep.subr.mxu0 0.0
        %1158 = vmatpush1.msra.mxu0 0.0
        %1159 = vmatprep.mubr.f32.mxu0 0.0
        %v1160 = vand.u32 %v939, 4294901760
        %v1161 = vsub.f32 %v939, %v1160
        %1162 = vmatmul.mubr.f32.gmra.mrb[0].mxu0 %v1161
        %v1163 = vpop.f32.mrb[0].mxu0
        %v1164 = vadd.f32 %v1090, %v1163
        %v1165 = vpop.f32.mrb[0].mxu0
        %1166 = vdwg.mxu0
        %1167 = vmatprep.subr.mxu0 0.0
        %v1168 = vand.u32 %v485, 4294901760
        %1169 = vmatpush1.msra.mxu0 %v1168
        %1170 = vmatprep.subr.mxu0 0.0
        %1171 = vmatpush1.msra.mxu0 0.0
        %1172 = vmatprep.subr.mxu0 0.0
        %1173 = vmatpush1.msra.mxu0 0.0
        %1174 = vmatprep.subr.mxu0 0.0
        %1175 = vmatpush1.msra.mxu0 0.0
        %1176 = vmatprep.subr.mxu0 0.0
        %1177 = vmatpush1.msra.mxu0 0.0
        %1178 = vmatprep.subr.mxu0 0.0
        %1179 = vmatpush1.msra.mxu0 0.0
        %1180 = vmatprep.subr.mxu0 0.0
        %1181 = vmatpush1.msra.mxu0 0.0
        %1182 = vmatprep.subr.mxu0 0.0
        %1183 = vmatpush1.msra.mxu0 0.0
        %1184 = vmatprep.subr.mxu0 0.0
        %1185 = vmatpush1.msra.mxu0 0.0
        %1186 = vmatprep.subr.mxu0 0.0
        %1187 = vmatpush1.msra.mxu0 0.0
        %1188 = vmatprep.subr.mxu0 0.0
        %1189 = vmatpush1.msra.mxu0 0.0
        %1190 = vmatprep.subr.mxu0 0.0
        %1191 = vmatpush1.msra.mxu0 0.0
        %1192 = vmatprep.subr.mxu0 0.0
        %1193 = vmatpush1.msra.mxu0 0.0
        %1194 = vmatprep.subr.mxu0 0.0
        %1195 = vmatpush1.msra.mxu0 0.0
        %1196 = vmatprep.subr.mxu0 0.0
        %1197 = vmatpush1.msra.mxu0 0.0
        %1198 = vmatprep.subr.mxu0 0.0
        %1199 = vmatpush1.msra.mxu0 0.0
        %1200 = vmatprep.subr.mxu0 0.0
        %1201 = vmatpush1.msra.mxu0 0.0
        %1202 = vmatprep.subr.mxu0 0.0
        %1203 = vmatpush1.msra.mxu0 0.0
        %1204 = vmatprep.subr.mxu0 0.0
        %1205 = vmatpush1.msra.mxu0 0.0
        %1206 = vmatprep.subr.mxu0 0.0
        %1207 = vmatpush1.msra.mxu0 0.0
        %1208 = vmatprep.subr.mxu0 0.0
        %1209 = vmatpush1.msra.mxu0 0.0
        %1210 = vmatprep.subr.mxu0 0.0
        %1211 = vmatpush1.msra.mxu0 0.0
        %1212 = vmatprep.subr.mxu0 0.0
        %1213 = vmatpush1.msra.mxu0 0.0
        %1214 = vmatprep.subr.mxu0 0.0
        %1215 = vmatpush1.msra.mxu0 0.0
        %1216 = vmatprep.subr.mxu0 0.0
        %1217 = vmatpush1.msra.mxu0 0.0
        %1218 = vmatprep.subr.mxu0 0.0
        %1219 = vmatpush1.msra.mxu0 0.0
        %1220 = vmatprep.subr.mxu0 0.0
        %1221 = vmatpush1.msra.mxu0 0.0
        %1222 = vmatprep.subr.mxu0 0.0
        %1223 = vmatpush1.msra.mxu0 0.0
        %1224 = vmatprep.subr.mxu0 0.0
        %1225 = vmatpush1.msra.mxu0 0.0
        %1226 = vmatprep.subr.mxu0 0.0
        %1227 = vmatpush1.msra.mxu0 0.0
        %1228 = vmatprep.subr.mxu0 0.0
        %1229 = vmatpush1.msra.mxu0 0.0
        %1230 = vmatprep.subr.mxu0 0.0
        %1231 = vmatpush1.msra.mxu0 0.0
        %1232 = vmatprep.mubr.f32.mxu0 0.0
        %v1233 = vand.u32 %v939, 4294901760
        %v1234 = vsub.f32 %v939, %v1233
        %v1235 = vand.u32 %v1234, 4294901760
        %1236 = vmatmul.mubr.f32.gmra.mrb[0].mxu0 %v1235
        %v1237 = vpop.f32.mrb[0].mxu0
        %v1238 = vadd.f32 %v1164, %v1237
        %v1239 = vpop.f32.mrb[0].mxu0
        %1240 = vdwg.mxu0
        %1241 = vmatprep.subr.mxu0 0.0
        %v1242 = vand.u32 %v485, 4294901760
        %v1243 = vsub.f32 %v485, %v1242
        %v1244 = vand.u32 %v1243, 4294901760
        %1245 = vmatpush1.msra.mxu0 %v1244
        %1246 = vmatprep.subr.mxu0 0.0
        %1247 = vmatpush1.msra.mxu0 0.0
        %1248 = vmatprep.subr.mxu0 0.0
        %1249 = vmatpush1.msra.mxu0 0.0
        %1250 = vmatprep.subr.mxu0 0.0
        %1251 = vmatpush1.msra.mxu0 0.0
        %1252 = vmatprep.subr.mxu0 0.0
        %1253 = vmatpush1.msra.mxu0 0.0
        %1254 = vmatprep.subr.mxu0 0.0
        %1255 = vmatpush1.msra.mxu0 0.0
        %1256 = vmatprep.subr.mxu0 0.0
        %1257 = vmatpush1.msra.mxu0 0.0
        %1258 = vmatprep.subr.mxu0 0.0
        %1259 = vmatpush1.msra.mxu0 0.0
        %1260 = vmatprep.subr.mxu0 0.0
        %1261 = vmatpush1.msra.mxu0 0.0
        %1262 = vmatprep.subr.mxu0 0.0
        %1263 = vmatpush1.msra.mxu0 0.0
        %1264 = vmatprep.subr.mxu0 0.0
        %1265 = vmatpush1.msra.mxu0 0.0
        %1266 = vmatprep.subr.mxu0 0.0
        %1267 = vmatpush1.msra.mxu0 0.0
        %1268 = vmatprep.subr.mxu0 0.0
        %1269 = vmatpush1.msra.mxu0 0.0
        %1270 = vmatprep.subr.mxu0 0.0
        %1271 = vmatpush1.msra.mxu0 0.0
        %1272 = vmatprep.subr.mxu0 0.0
        %1273 = vmatpush1.msra.mxu0 0.0
        %1274 = vmatprep.subr.mxu0 0.0
        %1275 = vmatpush1.msra.mxu0 0.0
        %1276 = vmatprep.subr.mxu0 0.0
        %1277 = vmatpush1.msra.mxu0 0.0
        %1278 = vmatprep.subr.mxu0 0.0
        %1279 = vmatpush1.msra.mxu0 0.0
        %1280 = vmatprep.subr.mxu0 0.0
        %1281 = vmatpush1.msra.mxu0 0.0
        %1282 = vmatprep.subr.mxu0 0.0
        %1283 = vmatpush1.msra.mxu0 0.0
        %1284 = vmatprep.subr.mxu0 0.0
        %1285 = vmatpush1.msra.mxu0 0.0
        %1286 = vmatprep.subr.mxu0 0.0
        %1287 = vmatpush1.msra.mxu0 0.0
        %1288 = vmatprep.subr.mxu0 0.0
        %1289 = vmatpush1.msra.mxu0 0.0
        %1290 = vmatprep.subr.mxu0 0.0
        %1291 = vmatpush1.msra.mxu0 0.0
        %1292 = vmatprep.subr.mxu0 0.0
        %1293 = vmatpush1.msra.mxu0 0.0
        %1294 = vmatprep.subr.mxu0 0.0
        %1295 = vmatpush1.msra.mxu0 0.0
        %1296 = vmatprep.subr.mxu0 0.0
        %1297 = vmatpush1.msra.mxu0 0.0
        %1298 = vmatprep.subr.mxu0 0.0
        %1299 = vmatpush1.msra.mxu0 0.0
        %1300 = vmatprep.subr.mxu0 0.0
        %1301 = vmatpush1.msra.mxu0 0.0
        %1302 = vmatprep.subr.mxu0 0.0
        %1303 = vmatpush1.msra.mxu0 0.0
        %1304 = vmatprep.subr.mxu0 0.0
        %1305 = vmatpush1.msra.mxu0 0.0
        %1306 = vmatprep.subr.mxu0 0.0
        %1307 = vmatpush1.msra.mxu0 0.0
        %1308 = vmatprep.mubr.f32.mxu0 0.0
        %v1309 = vand.u32 %v939, 4294901760
        %1310 = vmatmul.mubr.f32.gmra.mrb[0].mxu0 %v1309
        %v1311 = vpop.f32.mrb[0].mxu0
        %v1312 = vadd.f32 %v1238, %v1311
        %v1313 = vpop.f32.mrb[0].mxu0
        %1314 = vdwg.mxu0
        %1315 = vmatprep.subr.mxu0 0.0
        %v1316 = vand.u32 %v485, 4294901760
        %1317 = vmatpush1.msra.mxu0 %v1316
        %1318 = vmatprep.subr.mxu0 0.0
        %1319 = vmatpush1.msra.mxu0 0.0
        %1320 = vmatprep.subr.mxu0 0.0
        %1321 = vmatpush1.msra.mxu0 0.0
        %1322 = vmatprep.subr.mxu0 0.0
        %1323 = vmatpush1.msra.mxu0 0.0
        %1324 = vmatprep.subr.mxu0 0.0
        %1325 = vmatpush1.msra.mxu0 0.0
        %1326 = vmatprep.subr.mxu0 0.0
        %1327 = vmatpush1.msra.mxu0 0.0
        %1328 = vmatprep.subr.mxu0 0.0
        %1329 = vmatpush1.msra.mxu0 0.0
        %1330 = vmatprep.subr.mxu0 0.0
        %1331 = vmatpush1.msra.mxu0 0.0
        %1332 = vmatprep.subr.mxu0 0.0
        %1333 = vmatpush1.msra.mxu0 0.0
        %1334 = vmatprep.subr.mxu0 0.0
        %1335 = vmatpush1.msra.mxu0 0.0
        %1336 = vmatprep.subr.mxu0 0.0
        %1337 = vmatpush1.msra.mxu0 0.0
        %1338 = vmatprep.subr.mxu0 0.0
        %1339 = vmatpush1.msra.mxu0 0.0
        %1340 = vmatprep.subr.mxu0 0.0
        %1341 = vmatpush1.msra.mxu0 0.0
        %1342 = vmatprep.subr.mxu0 0.0
        %1343 = vmatpush1.msra.mxu0 0.0
        %1344 = vmatprep.subr.mxu0 0.0
        %1345 = vmatpush1.msra.mxu0 0.0
        %1346 = vmatprep.subr.mxu0 0.0
        %1347 = vmatpush1.msra.mxu0 0.0
        %1348 = vmatprep.subr.mxu0 0.0
        %1349 = vmatpush1.msra.mxu0 0.0
        %1350 = vmatprep.subr.mxu0 0.0
        %1351 = vmatpush1.msra.mxu0 0.0
        %1352 = vmatprep.subr.mxu0 0.0
        %1353 = vmatpush1.msra.mxu0 0.0
        %1354 = vmatprep.subr.mxu0 0.0
        %1355 = vmatpush1.msra.mxu0 0.0
        %1356 = vmatprep.subr.mxu0 0.0
        %1357 = vmatpush1.msra.mxu0 0.0
        %1358 = vmatprep.subr.mxu0 0.0
        %1359 = vmatpush1.msra.mxu0 0.0
        %1360 = vmatprep.subr.mxu0 0.0
        %1361 = vmatpush1.msra.mxu0 0.0
        %1362 = vmatprep.subr.mxu0 0.0
        %1363 = vmatpush1.msra.mxu0 0.0
        %1364 = vmatprep.subr.mxu0 0.0
        %1365 = vmatpush1.msra.mxu0 0.0
        %1366 = vmatprep.subr.mxu0 0.0
        %1367 = vmatpush1.msra.mxu0 0.0
        %1368 = vmatprep.subr.mxu0 0.0
        %1369 = vmatpush1.msra.mxu0 0.0
        %1370 = vmatprep.subr.mxu0 0.0
        %1371 = vmatpush1.msra.mxu0 0.0
        %1372 = vmatprep.subr.mxu0 0.0
        %1373 = vmatpush1.msra.mxu0 0.0
        %1374 = vmatprep.subr.mxu0 0.0
        %1375 = vmatpush1.msra.mxu0 0.0
        %1376 = vmatprep.subr.mxu0 0.0
        %1377 = vmatpush1.msra.mxu0 0.0
        %1378 = vmatprep.subr.mxu0 0.0
        %1379 = vmatpush1.msra.mxu0 0.0
        %1380 = vmatprep.mubr.f32.mxu0 0.0
        %v1381 = vand.u32 %v939, 4294901760
        %1382 = vmatmul.mubr.f32.gmra.mrb[0].mxu0 %v1381
        %v1383 = vpop.f32.mrb[0].mxu0
        %v1384 = vadd.f32 %v1312, %v1383
        %v1385 = vpop.f32.mrb[0].mxu0
        %1386 = vdwg.mxu0
        %v1387 = vld [vmem:[%s443] sm:$0xff]
        %1389 = vset.pattern.permute.xlu0 0
        %1390 = vperm.xlu0 %1389, %v1387
        %v1391 = vpop.permute.xlu0 %1390
        %v1393 = vadd.f32 %v1384, %v1391
        %v1394 = vsub.f32 %v1393, %v469
        %v1395 = vmul.f32 %v1394, %v1394
        %1396 = vst [vmem:[%s431] sm:$0xff] %v1395
        %s1397 = sand.u32 %s250, 1
        %s1398 = scalar_lea.sflag [#allocation4], %s1397
        %s1399 = sand.u32 %s250, 1
        %s1400 = smul.addr %s1399, 8
        %s1401 = scalar_lea.vmem [#allocation7], %s1400
        // Predicated region
        $region61: #{tpu_custom_call.1} parent=51 // pred_check
          %p1402 = pneg %p260
        $region62: #{tpu_custom_call.1} parent=51 // pred_check_branch
          %1404 = sbr.rel (%p1402) target = $region64
        $region63: #{tpu_custom_call.1} parent=51 // pred_region
          %s1406 = ssub.s32 128, 128
          %1407 = vsyncadd %s1398, %s1406
          %s1408 = smul.addr %s28, 2
          %s1409 = sadd.s32 %s29, %s1408
          %s1410 = smul.addr %s1409, 128
          %s1411 = scalar_lea.hbm %s8, %s1410
          %s1413 = sshll.u32 %s1401, 4
          %s1414 = int_to_ptr.vmem [resolvable:$true] %s1413
          %1416 = dma.vmem_to_hbm [thread:$0]  %s1414, 128, %s1411, %s1398
        $region64: #{tpu_custom_call.1} parent=51 // pred_fallthru
          _
      $region52: #{tpu_custom_call.1} parent=5 // pred_fallthru
        _
      %p1417 = scmp.le.s32.totalorder 2, %s19
      // Predicated region
      $region65: #{tpu_custom_call.1} parent=5 // pred_check
        %p1418 = pneg %p1417
      $region66: #{tpu_custom_call.1} parent=5 // pred_check_branch
        %1420 = sbr.rel (%p1418) target = $region68
      $region67: #{tpu_custom_call.1} parent=5 // pred_region
        %s1421 = ssub.s32 %s19, 2
        // Predicated region
        $region69: #{tpu_custom_call.1} parent=67 // pred_check
          %p1422 = pneg %p266
        $region70: #{tpu_custom_call.1} parent=67 // pred_check_branch
          %1424 = sbr.rel (%p1422) target = $region72
        $region71: #{tpu_custom_call.1} parent=67 // pred_region
          %s1425 = sand.u32 %s251, 1
          %s1426 = scalar_lea.sflag [#allocation4], %s1425
          %s1427 = sand.u32 %s251, 1
          %s1428 = smul.addr %s1427, 8
          %s1429 = scalar_lea.vmem [#allocation7], %s1428
          %1430 = dma.done %s1426, 128
        $region72: #{tpu_custom_call.1} parent=67 // pred_fallthru
          _
      $region68: #{tpu_custom_call.1} parent=5 // pred_fallthru
        _
    $region6: #{tpu_custom_call.1} parent=1 // loop_footer
      %s23 = sadd.s32 1, %s19
    $region7: #{tpu_custom_call.1} parent=1 // loop_footer_branch
      %18 = sbr.rel target = $region3
    $region8: #{tpu_custom_call.1} parent=1 // loop_exit
      _
    %1431 = vsyncpa [#allocation3], 1
    %s1432 = scalar_lea.sflag [#allocation3], 1
    %1433 = vsyncpa %s1432, 1
    %1434 = vsyncpa [#allocation6], 1
    %1435 = vsyncpa [#allocation4], 1
    %s1436 = scalar_lea.sflag [#allocation4], 1
    %1437 = vsyncpa %s1436, 1

</llo_original>
